<compile_context>
chip_gen: v7x
topology: tpu7x:2x2x1
jax: 0.10.0
libtpu: 0.0.40
codegen_flags: <defaults>
</compile_context>

<pallas_src>
import numpy as np
import jax
import jax.numpy as jnp
from jax import lax
from jax.experimental import pallas as pl
from jax.experimental.pallas import tpu as pltpu

BN_EPS = 1e-3
TILE_P_DEFAULT = 256          # output positions (matmul M) per grid step
LANE = 128                    # lane width / MXU N granularity


def _round_up(a, b):
    return (a + b - 1) // b * b


def _conv_bn_relu_kernel(p_ref, w_ref, b_ref, o_ref):
    # p_ref: (TILE_P, K)       bf16 im2col patches
    # w_ref: (K, C_pad)        bf16 conv weight with BN scale folded in
    # b_ref: (1, C_pad)        f32 folded BN bias
    # o_ref: (TILE_P, C_pad)   f32 output (lane-dense, C_pad % 128 == 0)
    acc = jnp.dot(p_ref[...], w_ref[...], preferred_element_type=jnp.float32)
    o_ref[...] = jnp.maximum(acc + b_ref[...], 0.0).astype(o_ref.dtype)


def _im2col(x_ndhwc, kdims, stride):
    """x: (N,D,H,W,C) -> (P, kd*kh*kw*C) with tap order (kd, kh, kw, c)."""
    N, D, H, W, C = x_ndhwc.shape
    kd, kh, kw = kdims
    Do = (D - kd) // stride + 1
    Ho = (H - kh) // stride + 1
    Wo = (W - kw) // stride + 1
    taps = []
    for a in range(kd):
        for b in range(kh):
            for c in range(kw):
                taps.append(
                    x_ndhwc[:,
                            a:a + stride * Do:stride,
                            b:b + stride * Ho:stride,
                            c:c + stride * Wo:stride,
                            :])
    p = jnp.stack(taps, axis=-2)                              # (N,Do,Ho,Wo,ktaps,C)
    p = p.reshape(N * Do * Ho * Wo, kd * kh * kw * C)         # (P, K)
    return p, (N, Do, Ho, Wo)


def basic_conv3d_forward(x_ncdhw, conv_w, gamma, beta, run_mean, run_var,
                         *, stride=1, padding=0, eps=BN_EPS,
                         tile_p=TILE_P_DEFAULT):
    """BasicConv3d forward (eval mode).

    x_ncdhw: (N, Cin, D, H, W) f32
    conv_w:  (Cout, Cin, kd, kh, kw) f32
    Returns (N, Cout, Do, Ho, Wo) f32.
    """
    N, C_in, D, H, W = x_ncdhw.shape
    C_out, C_in_w, kd, kh, kw = conv_w.shape
    assert C_in == C_in_w
    K_flat = kd * kh * kw * C_in

    if padding:
        p = padding
        x_ncdhw = jnp.pad(x_ncdhw, ((0, 0), (0, 0), (p, p), (p, p), (p, p)))

    x = jnp.transpose(x_ncdhw, (0, 2, 3, 4, 1))               # NCDHW -> NDHWC
    patches, (N_, Do, Ho, Wo) = _im2col(x, (kd, kh, kw), stride)
    P = patches.shape[0]

    # Conv weight (Cout,Cin,kd,kh,kw) -> (kd,kh,kw,Cin,Cout) -> (K, Cout),
    # matching the patch tap/channel ordering above.
    w_mat = jnp.transpose(conv_w, (2, 3, 4, 1, 0)).reshape(K_flat, C_out)

    # Fold eval-mode BN: scale goes into the weight, bias is added in-kernel.
    scale = gamma / jnp.sqrt(run_var + eps)                   # (Cout,)
    bias = beta - run_mean * scale                            # (Cout,)
    w_mat = w_mat * scale[None, :]

    # Pad Cout to a multiple of 128 for full-width MXU passes and lane-dense
    # (unmasked) output stores. Zero weight / zero bias -> padded lanes are 0.
    C_pad = max(LANE, _round_up(C_out, LANE))
    if C_pad != C_out:
        w_mat = jnp.pad(w_mat, ((0, 0), (0, C_pad - C_out)))
        bias = jnp.pad(bias, ((0, C_pad - C_out)))
    bias = bias.reshape(1, C_pad).astype(jnp.float32)

    # Tile size: multiple of 128 (MXU M dim), capped so tiny problems don't
    # over-pad; pad P up to a multiple of it (padded rows discarded below).
    tile_p = min(tile_p, max(LANE, _round_up(P, LANE)))
    P_pad = _round_up(P, tile_p)
    if P_pad != P:
        patches = jnp.pad(patches, ((0, P_pad - P), (0, 0)))

    # bf16 MXU inputs, f32 accumulation.
    patches_bf16 = patches.astype(jnp.bfloat16)
    w_bf16 = w_mat.astype(jnp.bfloat16)

    grid = (P_pad // tile_p,)
    out_pad = pl.pallas_call(
        _conv_bn_relu_kernel,
        out_shape=jax.ShapeDtypeStruct((P_pad, C_pad), jnp.float32),
        grid_spec=pltpu.PrefetchScalarGridSpec(
            num_scalar_prefetch=0,
            grid=grid,
            in_specs=[
                pl.BlockSpec((tile_p, K_flat), lambda i: (i, 0)),
                pl.BlockSpec((K_flat, C_pad), lambda i: (0, 0)),
                pl.BlockSpec((1, C_pad), lambda i: (0, 0)),
            ],
            out_specs=pl.BlockSpec((tile_p, C_pad), lambda i: (i, 0)),
        ),
        compiler_params=pltpu.CompilerParams(
            dimension_semantics=("parallel",),
            vmem_limit_bytes=48 * 1024 * 1024,   # <= v7x 64 MiB physical VMEM
        ),
    )(patches_bf16, w_bf16, bias)

    out = out_pad[:P, :C_out]                                 # drop row/col padding
    out = out.reshape(N, Do, Ho, Wo, C_out)
    out = jnp.transpose(out, (0, 4, 1, 2, 3))                 # -> NCDHW
    return out


def _reference(x, w, gamma, beta, run_mean, run_var, stride, padding, eps=BN_EPS):
    conv = lax.conv_general_dilated(
        x, w, window_strides=(stride,) * 3,
        padding=[(padding, padding)] * 3,
        dimension_numbers=("NCDHW", "OIDHW", "NCDHW"),
        precision=lax.Precision.HIGHEST)
    scale = gamma / jnp.sqrt(run_var + eps)
    bias = beta - run_mean * scale
    out = conv * scale[None, :, None, None, None] + bias[None, :, None, None, None]
    return jnp.maximum(out, 0.0)


if __name__ == "__main__":
    key = jax.random.PRNGKey(0)
    k_x, k_w, k_g, k_b, k_m, k_v = jax.random.split(key, 6)

    # Small but representative BasicConv3d config (stride-2 VALID stem conv).
    N, C_IN, D, H, W = 2, 64, 9, 17, 17
    C_OUT, KS, STRIDE, PAD = 96, 3, 2, 0

    x = jax.random.normal(k_x, (N, C_IN, D, H, W), dtype=jnp.float32)
    conv_w = jax.random.normal(k_w, (C_OUT, C_IN, KS, KS, KS), dtype=jnp.float32) * 0.02
    gamma = jax.random.uniform(k_g, (C_OUT,), minval=0.5, maxval=1.5, dtype=jnp.float32)
    beta = jax.random.normal(k_b, (C_OUT,), dtype=jnp.float32) * 0.1
    run_mean = jax.random.normal(k_m, (C_OUT,), dtype=jnp.float32) * 0.1
    run_var = jax.random.uniform(k_v, (C_OUT,), minval=0.5, maxval=1.5, dtype=jnp.float32)

    out = basic_conv3d_forward(x, conv_w, gamma, beta, run_mean, run_var,
                               stride=STRIDE, padding=PAD)
    out = jax.block_until_ready(out)

    ref = jax.block_until_ready(
        _reference(x, conv_w, gamma, beta, run_mean, run_var, STRIDE, PAD))

    assert out.shape == ref.shape == (N, C_OUT, 4, 8, 8), out.shape
    # bf16 MXU inputs with f32 accumulation vs an f32 HIGHEST-precision reference.
    np.testing.assert_allclose(np.asarray(out), np.asarray(ref), rtol=3e-2, atol=3e-2)

    print("KERNEL_OK")
</pallas_src>

<mosaic_0001>
module attributes {stable_mosaic.version = 11 : i64} {
  func.func @_conv_bn_relu_kernel(%arg0: i32, %arg1: memref<256x1728xbf16, #tpu.memory_space<vmem>>, %arg2: memref<1728x128xbf16, #tpu.memory_space<vmem>>, %arg3: memref<1x128xf32, #tpu.memory_space<vmem>>, %arg4: memref<256x128xf32, #tpu.memory_space<vmem>>) attributes {dimension_semantics = [#tpu.dimension_semantics<parallel>], iteration_bounds = array<i64: 2>, scalar_prefetch = 0 : i64, scratch_operands = 0 : i64, tpu.core_type = #tpu.core_type<tc>, window_params = [{transform_indices = @transform_0, window_bounds = array<i64: 256, 1728>}, {pipeline_mode = #tpu.pipeline_mode<synchronous>, transform_indices = @transform_1, window_bounds = array<i64: 1728, 128>}, {pipeline_mode = #tpu.pipeline_mode<synchronous>, transform_indices = @transform_2, window_bounds = array<i64: 1, 128>}, {transform_indices = @transform_3, window_bounds = array<i64: 256, 128>}]} {
    %c0 = arith.constant 0 : index
    %c0_0 = arith.constant 0 : index
    %0 = vector.load %arg1[%c0, %c0_0] : memref<256x1728xbf16, #tpu.memory_space<vmem>>, vector<256x1728xbf16>
    %c0_1 = arith.constant 0 : index
    %c0_2 = arith.constant 0 : index
    %1 = vector.load %arg2[%c0_1, %c0_2] : memref<1728x128xbf16, #tpu.memory_space<vmem>>, vector<1728x128xbf16>
    %cst = arith.constant dense<0.000000e+00> : vector<256x128xf32>
    %2 = tpu.matmul %0, %1, %cst {dimension_numbers = #tpu.dot_dimension_numbers<[1], [0], [0], [1], [0, 0, 1, 1], [], []>} : vector<256x1728xbf16>, vector<1728x128xbf16>, vector<256x128xf32> -> vector<256x128xf32>
    %c0_3 = arith.constant 0 : index
    %c0_4 = arith.constant 0 : index
    %3 = vector.load %arg3[%c0_3, %c0_4] : memref<1x128xf32, #tpu.memory_space<vmem>>, vector<1x128xf32>
    %4 = vector.broadcast %3 : vector<1x128xf32> to vector<256x128xf32>
    %5 = arith.addf %2, %4 : vector<256x128xf32>
    %cst_5 = arith.constant 0.000000e+00 : f32
    %6 = vector.broadcast %cst_5 : f32 to vector<256x128xf32>
    %7 = arith.maximumf %5, %6 : vector<256x128xf32>
    %c0_6 = arith.constant 0 : index
    %c0_7 = arith.constant 0 : index
    %8 = vector.load %arg4[%c0_6, %c0_7] : memref<256x128xf32, #tpu.memory_space<vmem>>, vector<256x128xf32>
    tpu.vector_store %arg4[%c0_6, %c0_7], %7 {strides = array<i32>} : memref<256x128xf32, #tpu.memory_space<vmem>>, vector<256x128xf32>,
    return
  }
  func.func @transform_0(%arg0: i32) -> (i32, i32) {
    %c0_i32 = arith.constant 0 : i32
    %c0_i32_0 = arith.constant 0 : i32
    return %arg0, %c0_i32 : i32, i32
  }
  func.func @transform_1(%arg0: i32) -> (i32, i32) {
    %c0_i32 = arith.constant 0 : i32
    %c0_i32_0 = arith.constant 0 : i32
    %c0_i32_1 = arith.constant 0 : i32
    return %c0_i32, %c0_i32_0 : i32, i32
  }
  func.func @transform_2(%arg0: i32) -> (i32, i32) {
    %c0_i32 = arith.constant 0 : i32
    %c0_i32_0 = arith.constant 0 : i32
    %c0_i32_1 = arith.constant 0 : i32
    return %c0_i32, %c0_i32_0 : i32, i32
  }
  func.func @transform_3(%arg0: i32) -> (i32, i32) {
    %c0_i32 = arith.constant 0 : i32
    %c0_i32_0 = arith.constant 0 : i32
    return %arg0, %c0_i32 : i32, i32
  }
}

</mosaic_0001>

<llo_original>
// kernel: tpu_custom_call.1
$region0: #{tpu_custom_call.1}
  #allocation0 [shape = 'u32[]', space=smem, size = 0x4, offset = 0x4, fixed_abs, tag = 'smem constant byte address 0x4 - core index']
  #allocation1 [shape = 'u32[144,128]{1,0:T(1,128)}', space=vmem, size = 0x12000, scoped, tag = 'internal scratch']
  %s0 = inlined_call_operand.vmem [shape: bf16[512,1728], index: 0, kind: input, shape index: {}]
  %s1 = inlined_call_operand.vmem [shape: bf16[1728,128], index: 1, kind: input, shape index: {}]
  %s2 = inlined_call_operand.vmem [shape: f32[1,128], index: 2, kind: input, shape index: {}]
  %s3 = inlined_call_operand.hbm [shape: f32[512,128], index: 3, kind: output, shape index: {}]
  %s4 = sld [smem:[#allocation0]]
  $region45: #{tpu_custom_call.1} parent=0
    _
  %s6 = ssub.s32 1, %s4
  %s7 = scalar_select 0, %s6, %s4
  $region1: #{tpu_custom_call.1} parent=0
    #allocation2 [shape = 'u8[262144]{0}', space=vmem, size = 0x40000, scoped, tag = 'output window, operand 0']
    #allocation3 [shape = 's32[2]{0}', space=sflag, size = 0x8, scoped, tag = 'scoped memory for tpu_custom_call.1']
    %8 = vsyncpa [#allocation3], 0
    %s9 = scalar_lea.sflag [#allocation3], 1
    %10 = vsyncpa %s9, 0
    loop: start=0, step=1, limit=4
    $region2: #{tpu_custom_call.1} parent=1 // loop_pre_header
      _
    $region3: #{tpu_custom_call.1} parent=1 // loop_header
      %s12 = sphi 0, %s16
      %p13 = scmp.ge.s32.totalorder %s12, 4
      %s22 = sphi 0, %s24
      %s25 = sphi 0, %s22
      %s26 = sphi 0, %s25
      %s42 = sphi 0, %s26
      %s46 = sphi 0, %s46
      %s48 = sphi 0, %s46
      %s49 = sphi 0, %s48
      %s63 = sphi 0, %s49
      %s67 = sphi 0, %s67
      %s69 = sphi 0, %s67
      %s70 = sphi 0, %s69
      %s84 = sphi 0, %s70
      %s90 = sphi 0, %s92
      %s93 = sphi 0, %s90
      %s94 = sphi 0, %s93
      %s110 = sphi 0, %s94
    $region4: #{tpu_custom_call.1} parent=1 // loop_header_branch
      %15 = sbr.rel (%p13) target = $region8
    $region5: #{tpu_custom_call.1} parent=1 // loop_body
      %s17 = ssub.s32 %s12, 1
      %s18 = ssub.s32 %s12, 2
      %s19 = sadd.s32 %s12, 1
      %s20 = ssub.s32 %s12, %s19
      %p21 = scmp.eq.s32.totalorder %s20, 0
      %s23 = sadd.s32 %s22, 1
      %s24 = scalar_select %p21, %s22, %s23
      %p27 = pneg %p21
      %p28 = scmp.eq.s32.totalorder %s12, 1
      %p29 = por %p27, %p28
      %p30 = scmp.ne.s32.totalorder %s22, %s25
      %p31 = scmp.eq.s32.totalorder %s12, 0
      %p32 = por %p30, %p31
      %p33 = scmp.ne.s32.totalorder %s22, %s25
      %p34 = scmp.eq.s32.totalorder %s17, 1
      %p35 = por %p33, %p34
      %p36 = scmp.ne.s32.totalorder %s25, %s26
      %p37 = scmp.eq.s32.totalorder %s17, 0
      %p38 = por %p36, %p37
      %p39 = scmp.ne.s32.totalorder %s25, %s26
      %p40 = scmp.eq.s32.totalorder %s18, 1
      %p41 = por %p39, %p40
      %p43 = scmp.ne.s32.totalorder %s26, %s42
      %p44 = scmp.eq.s32.totalorder %s18, 0
      %p45 = por %p43, %p44
      %s47 = sadd.s32 %s46, 1
      %p50 = scmp.eq.s32.totalorder %s12, 1
      %p51 = scmp.ne.s32.totalorder %s46, %s48
      %p52 = scmp.eq.s32.totalorder %s12, 0
      %p53 = por %p51, %p52
      %p54 = scmp.ne.s32.totalorder %s46, %s48
      %p55 = scmp.eq.s32.totalorder %s17, 1
      %p56 = por %p54, %p55
      %p57 = scmp.ne.s32.totalorder %s48, %s49
      %p58 = scmp.eq.s32.totalorder %s17, 0
      %p59 = por %p57, %p58
      %p60 = scmp.ne.s32.totalorder %s48, %s49
      %p61 = scmp.eq.s32.totalorder %s18, 1
      %p62 = por %p60, %p61
      %p64 = scmp.ne.s32.totalorder %s49, %s63
      %p65 = scmp.eq.s32.totalorder %s18, 0
      %p66 = por %p64, %p65
      %s68 = sadd.s32 %s67, 1
      %p71 = scmp.eq.s32.totalorder %s12, 1
      %p72 = scmp.ne.s32.totalorder %s67, %s69
      %p73 = scmp.eq.s32.totalorder %s12, 0
      %p74 = por %p72, %p73
      %p75 = scmp.ne.s32.totalorder %s67, %s69
      %p76 = scmp.eq.s32.totalorder %s17, 1
      %p77 = por %p75, %p76
      %p78 = scmp.ne.s32.totalorder %s69, %s70
      %p79 = scmp.eq.s32.totalorder %s17, 0
      %p80 = por %p78, %p79
      %p81 = scmp.ne.s32.totalorder %s69, %s70
      %p82 = scmp.eq.s32.totalorder %s18, 1
      %p83 = por %p81, %p82
      %p85 = scmp.ne.s32.totalorder %s70, %s84
      %p86 = scmp.eq.s32.totalorder %s18, 0
      %p87 = por %p85, %p86
      %s88 = ssub.s32 %s12, %s19
      %p89 = scmp.eq.s32.totalorder %s88, 0
      %s91 = sadd.s32 %s90, 1
      %s92 = scalar_select %p89, %s90, %s91
      %p95 = pneg %p89
      %p96 = scmp.eq.s32.totalorder %s12, 1
      %p97 = por %p95, %p96
      %p98 = scmp.ne.s32.totalorder %s90, %s93
      %p99 = scmp.eq.s32.totalorder %s12, 0
      %p100 = por %p98, %p99
      %p101 = scmp.ne.s32.totalorder %s90, %s93
      %p102 = scmp.eq.s32.totalorder %s17, 1
      %p103 = por %p101, %p102
      %p104 = scmp.ne.s32.totalorder %s93, %s94
      %p105 = scmp.eq.s32.totalorder %s17, 0
      %p106 = por %p104, %p105
      %p107 = scmp.ne.s32.totalorder %s93, %s94
      %p108 = scmp.eq.s32.totalorder %s18, 1
      %p109 = por %p107, %p108
      %p111 = scmp.ne.s32.totalorder %s94, %s110
      %p112 = scmp.eq.s32.totalorder %s18, 0
      %p113 = por %p111, %p112
      %p114 = scmp.le.s32.totalorder 1, %s12
      %p115 = scmp.lt.s32.totalorder %s12, 3
      %p116 = pnand %p114, %p115
      %p117 = pneg %p116
      // Predicated region
      $region9: #{tpu_custom_call.1} parent=5 // pred_check
        _
      $region10: #{tpu_custom_call.1} parent=5 // pred_check_branch
        %119 = sbr.rel (%p116) target = $region12
      $region11: #{tpu_custom_call.1} parent=5 // pred_region
        %s120 = ssub.s32 %s12, 1
        // Predicated region
        $region13: #{tpu_custom_call.1} parent=11 // pred_check
          %p121 = pneg %p59
        $region14: #{tpu_custom_call.1} parent=11 // pred_check_branch
          %123 = sbr.rel (%p121) target = $region16
        $region15: #{tpu_custom_call.1} parent=11 // pred_region
          _
        $region16: #{tpu_custom_call.1} parent=11 // pred_fallthru
          _
        // Predicated region
        $region17: #{tpu_custom_call.1} parent=11 // pred_check
          %p124 = pneg %p80
        $region18: #{tpu_custom_call.1} parent=11 // pred_check_branch
          %126 = sbr.rel (%p124) target = $region20
        $region19: #{tpu_custom_call.1} parent=11 // pred_region
          _
        $region20: #{tpu_custom_call.1} parent=11 // pred_fallthru
          _
      $region12: #{tpu_custom_call.1} parent=5 // pred_fallthru
        _
      %p127 = scmp.lt.s32.totalorder %s12, 2
      // Predicated region
      $region21: #{tpu_custom_call.1} parent=5 // pred_check
        %p128 = pneg %p127
      $region22: #{tpu_custom_call.1} parent=5 // pred_check_branch
        %130 = sbr.rel (%p128) target = $region24
      $region23: #{tpu_custom_call.1} parent=5 // pred_region
        // Predicated region
        $region25: #{tpu_custom_call.1} parent=23 // pred_check
          %p131 = pneg %p32
        $region26: #{tpu_custom_call.1} parent=23 // pred_check_branch
          %133 = sbr.rel (%p131) target = $region28
        $region27: #{tpu_custom_call.1} parent=23 // pred_region
          %s134 = smul.u32 32, %s12
          %p135 = scmp.lt.s32.totalorder %s134, 63
          %s136 = scalar_select %p135, %s134, 63
          %s137 = smul.addr %s136, 14
          %s138 = smul.addr %s137, 4
          %s139 = scalar_lea.vmem %s0, %s138
          %s140 = smul.u32 32, %s12
        $region28: #{tpu_custom_call.1} parent=23 // pred_fallthru
          _
      $region24: #{tpu_custom_call.1} parent=5 // pred_fallthru
        _
      %p141 = scmp.le.s32.totalorder 1, %s12
      %p142 = scmp.lt.s32.totalorder %s12, 3
      %p143 = pnand %p141, %p142
      %p144 = pneg %p143
      // Predicated region
      $region29: #{tpu_custom_call.1} parent=5 // pred_check
        _
      $region30: #{tpu_custom_call.1} parent=5 // pred_check_branch
        %146 = sbr.rel (%p143) target = $region32
      $region31: #{tpu_custom_call.1} parent=5 // pred_region
        %s147 = ssub.s32 %s12, 1
        %s148 = smul.u32 32, %s17
        %p149 = scmp.lt.s32.totalorder %s148, 63
        %s150 = scalar_select %p149, %s148, 63
        %s151 = smul.addr %s150, 14
        %s152 = smul.addr %s151, 4
        %s153 = scalar_lea.vmem %s0, %s152
        %p154 = pneg %p38
        %p155 = pneg %p35
        %p156 = pneg %p59
        %p157 = pneg %p56
        %p158 = pneg %p80
        %p159 = pneg %p77
        %p160 = pneg %p106
        %p161 = pneg %p103
        %s162 = sand.u32 %s93, 1
        %s163 = scalar_lea.sflag [#allocation3], %s162
        %s164 = sand.u32 %s93, 1
        %s165 = smul.addr %s164, 256
        %s166 = scalar_lea.vmem [#allocation2], %s165
        %s167 = smul.u32 32, %s17
        %p168 = scmp.lt.s32.totalorder %s167, 63
        %s169 = scalar_select %p168, %s167, 63
        %s170 = smul.addr %s169, 14
        %s171 = smul.addr %s170, 4
        %s172 = scalar_lea.vmem %s0, %s171
        %s173 = smul.u32 32, %s17
        %s174 = smul.u32 32, %s17
        %v176 = vld [vmem:[%s172] sm:$0xff]
        %v177 = vld [vmem:[%s172 + $0x8] sm:$0xff]
        %v178 = vld [vmem:[%s172 + $0x10] sm:$0xff]
        %v179 = vld [vmem:[%s172 + $0x18] sm:$0xff]
        %v180 = vld [vmem:[%s172 + $0x20] sm:$0xff]
        %v181 = vld [vmem:[%s172 + $0x28] sm:$0xff]
        %v182 = vld [vmem:[%s172 + $0x30] sm:$0xff]
        %v183 = vld [vmem:[%s172 + $0x38] sm:$0xff]
        %v184 = vld [vmem:[%s172 + $0x40] sm:$0xff]
        %v185 = vld [vmem:[%s172 + $0x48] sm:$0xff]
        %v186 = vld [vmem:[%s172 + $0x50] sm:$0xff]
        %v187 = vld [vmem:[%s172 + $0x58] sm:$0xff]
        %v188 = vld [vmem:[%s172 + $0x60] sm:$0xff]
        %v189 = vld [vmem:[%s172 + $0x68] sm:$0xff]
        %v190 = vld [vmem:[%s172 + $0x70] sm:$0xff]
        %v191 = vld [vmem:[%s172 + $0x78] sm:$0xff]
        %v192 = vld [vmem:[%s172 + $0x80] sm:$0xff]
        %v193 = vld [vmem:[%s172 + $0x88] sm:$0xff]
        %v194 = vld [vmem:[%s172 + $0x90] sm:$0xff]
        %v195 = vld [vmem:[%s172 + $0x98] sm:$0xff]
        %v196 = vld [vmem:[%s172 + $0xa0] sm:$0xff]
        %v197 = vld [vmem:[%s172 + $0xa8] sm:$0xff]
        %v198 = vld [vmem:[%s172 + $0xb0] sm:$0xff]
        %v199 = vld [vmem:[%s172 + $0xb8] sm:$0xff]
        %v200 = vld [vmem:[%s172 + $0xc0] sm:$0xff]
        %v201 = vld [vmem:[%s172 + $0xc8] sm:$0xff]
        %v202 = vld [vmem:[%s172 + $0xd0] sm:$0xff]
        %v203 = vld [vmem:[%s172 + $0xd8] sm:$0xff]
        %v204 = vld [vmem:[%s172 + $0xe0] sm:$0xff]
        %v205 = vld [vmem:[%s172 + $0xe8] sm:$0xff]
        %v206 = vld [vmem:[%s172 + $0xf0] sm:$0xff]
        %v207 = vld [vmem:[%s172 + $0xf8] sm:$0xff]
        %v208 = vld [vmem:[%s172 + $0x100] sm:$0xff]
        %v209 = vld [vmem:[%s172 + $0x108] sm:$0xff]
        %v210 = vld [vmem:[%s172 + $0x110] sm:$0xff]
        %v211 = vld [vmem:[%s172 + $0x118] sm:$0xff]
        %v212 = vld [vmem:[%s172 + $0x120] sm:$0xff]
        %v213 = vld [vmem:[%s172 + $0x128] sm:$0xff]
        %v214 = vld [vmem:[%s172 + $0x130] sm:$0xff]
        %v215 = vld [vmem:[%s172 + $0x138] sm:$0xff]
        %v216 = vld [vmem:[%s172 + $0x140] sm:$0xff]
        %v217 = vld [vmem:[%s172 + $0x148] sm:$0xff]
        %v218 = vld [vmem:[%s172 + $0x150] sm:$0xff]
        %v219 = vld [vmem:[%s172 + $0x158] sm:$0xff]
        %v220 = vld [vmem:[%s172 + $0x160] sm:$0xff]
        %v221 = vld [vmem:[%s172 + $0x168] sm:$0xff]
        %v222 = vld [vmem:[%s172 + $0x170] sm:$0xff]
        %v223 = vld [vmem:[%s172 + $0x178] sm:$0xff]
        %v224 = vld [vmem:[%s172 + $0x180] sm:$0xff]
        %v225 = vld [vmem:[%s172 + $0x188] sm:$0xff]
        %v226 = vld [vmem:[%s172 + $0x190] sm:$0xff]
        %v227 = vld [vmem:[%s172 + $0x198] sm:$0xff]
        %v228 = vld [vmem:[%s172 + $0x1a0] sm:$0xff]
        %v229 = vld [vmem:[%s172 + $0x1a8] sm:$0xff]
        %v230 = vld [vmem:[%s172 + $0x1b0] sm:$0xff]
        %v231 = vld [vmem:[%s172 + $0x1b8] sm:$0xff]
        %v232 = vld [vmem:[%s172 + $0x1c0] sm:$0xff]
        %v233 = vld [vmem:[%s172 + $0x1c8] sm:$0xff]
        %v234 = vld [vmem:[%s172 + $0x1d0] sm:$0xff]
        %v235 = vld [vmem:[%s172 + $0x1d8] sm:$0xff]
        %v236 = vld [vmem:[%s172 + $0x1e0] sm:$0xff]
        %v237 = vld [vmem:[%s172 + $0x1e8] sm:$0xff]
        %v238 = vld [vmem:[%s172 + $0x1f0] sm:$0xff]
        %v239 = vld [vmem:[%s172 + $0x1f8] sm:$0xff]
        %v240 = vld [vmem:[%s172 + $0x200] sm:$0xff]
        %v241 = vld [vmem:[%s172 + $0x208] sm:$0xff]
        %v242 = vld [vmem:[%s172 + $0x210] sm:$0xff]
        %v243 = vld [vmem:[%s172 + $0x218] sm:$0xff]
        %v244 = vld [vmem:[%s172 + $0x220] sm:$0xff]
        %v245 = vld [vmem:[%s172 + $0x228] sm:$0xff]
        %v246 = vld [vmem:[%s172 + $0x230] sm:$0xff]
        %v247 = vld [vmem:[%s172 + $0x238] sm:$0xff]
        %v248 = vld [vmem:[%s172 + $0x240] sm:$0xff]
        %v249 = vld [vmem:[%s172 + $0x248] sm:$0xff]
        %v250 = vld [vmem:[%s172 + $0x250] sm:$0xff]
        %v251 = vld [vmem:[%s172 + $0x258] sm:$0xff]
        %v252 = vld [vmem:[%s172 + $0x260] sm:$0xff]
        %v253 = vld [vmem:[%s172 + $0x268] sm:$0xff]
        %v254 = vld [vmem:[%s172 + $0x270] sm:$0xff]
        %v255 = vld [vmem:[%s172 + $0x278] sm:$0xff]
        %v256 = vld [vmem:[%s172 + $0x280] sm:$0xff]
        %v257 = vld [vmem:[%s172 + $0x288] sm:$0xff]
        %v258 = vld [vmem:[%s172 + $0x290] sm:$0xff]
        %v259 = vld [vmem:[%s172 + $0x298] sm:$0xff]
        %v260 = vld [vmem:[%s172 + $0x2a0] sm:$0xff]
        %v261 = vld [vmem:[%s172 + $0x2a8] sm:$0xff]
        %v262 = vld [vmem:[%s172 + $0x2b0] sm:$0xff]
        %v263 = vld [vmem:[%s172 + $0x2b8] sm:$0xff]
        %v264 = vld [vmem:[%s172 + $0x2c0] sm:$0xff]
        %v265 = vld [vmem:[%s172 + $0x2c8] sm:$0xff]
        %v266 = vld [vmem:[%s172 + $0x2d0] sm:$0xff]
        %v267 = vld [vmem:[%s172 + $0x2d8] sm:$0xff]
        %v268 = vld [vmem:[%s172 + $0x2e0] sm:$0xff]
        %v269 = vld [vmem:[%s172 + $0x2e8] sm:$0xff]
        %v270 = vld [vmem:[%s172 + $0x2f0] sm:$0xff]
        %v271 = vld [vmem:[%s172 + $0x2f8] sm:$0xff]
        %v272 = vld [vmem:[%s172 + $0x300] sm:$0xff]
        %v273 = vld [vmem:[%s172 + $0x308] sm:$0xff]
        %v274 = vld [vmem:[%s172 + $0x310] sm:$0xff]
        %v275 = vld [vmem:[%s172 + $0x318] sm:$0xff]
        %v276 = vld [vmem:[%s172 + $0x320] sm:$0xff]
        %v277 = vld [vmem:[%s172 + $0x328] sm:$0xff]
        %v278 = vld [vmem:[%s172 + $0x330] sm:$0xff]
        %v279 = vld [vmem:[%s172 + $0x338] sm:$0xff]
        %v280 = vld [vmem:[%s172 + $0x340] sm:$0xff]
        %v281 = vld [vmem:[%s172 + $0x348] sm:$0xff]
        %v282 = vld [vmem:[%s172 + $0x350] sm:$0xff]
        %v283 = vld [vmem:[%s172 + $0x358] sm:$0xff]
        %v284 = vld [vmem:[%s172 + $0x360] sm:$0xff]
        %v285 = vld [vmem:[%s172 + $0x368] sm:$0xff]
        %v286 = vld [vmem:[%s172 + $0x370] sm:$0xff]
        %v287 = vld [vmem:[%s172 + $0x378] sm:$0xff]
        %v288 = vld [vmem:[%s172 + $0x380] sm:$0xff]
        %v289 = vld [vmem:[%s172 + $0x388] sm:$0xff]
        %v290 = vld [vmem:[%s172 + $0x390] sm:$0xff]
        %v291 = vld [vmem:[%s172 + $0x398] sm:$0xff]
        %v292 = vld [vmem:[%s172 + $0x3a0] sm:$0xff]
        %v293 = vld [vmem:[%s172 + $0x3a8] sm:$0xff]
        %v294 = vld [vmem:[%s172 + $0x3b0] sm:$0xff]
        %v295 = vld [vmem:[%s172 + $0x3b8] sm:$0xff]
        %v296 = vld [vmem:[%s172 + $0x3c0] sm:$0xff]
        %v297 = vld [vmem:[%s172 + $0x3c8] sm:$0xff]
        %v298 = vld [vmem:[%s172 + $0x3d0] sm:$0xff]
        %v299 = vld [vmem:[%s172 + $0x3d8] sm:$0xff]
        %v300 = vld [vmem:[%s172 + $0x3e0] sm:$0xff]
        %v301 = vld [vmem:[%s172 + $0x3e8] sm:$0xff]
        %v302 = vld [vmem:[%s172 + $0x3f0] sm:$0xff]
        %v303 = vld [vmem:[%s172 + $0x3f8] sm:$0xff]
        %v304 = vld [vmem:[%s172 + $0x400] sm:$0xff]
        %v305 = vld [vmem:[%s172 + $0x408] sm:$0xff]
        %v306 = vld [vmem:[%s172 + $0x410] sm:$0xff]
        %v307 = vld [vmem:[%s172 + $0x418] sm:$0xff]
        %v308 = vld [vmem:[%s172 + $0x420] sm:$0xff]
        %v309 = vld [vmem:[%s172 + $0x428] sm:$0xff]
        %v310 = vld [vmem:[%s172 + $0x430] sm:$0xff]
        %v311 = vld [vmem:[%s172 + $0x438] sm:$0xff]
        %v312 = vld [vmem:[%s172 + $0x440] sm:$0xff]
        %v313 = vld [vmem:[%s172 + $0x448] sm:$0xff]
        %v314 = vld [vmem:[%s172 + $0x450] sm:$0xff]
        %v315 = vld [vmem:[%s172 + $0x458] sm:$0xff]
        %v316 = vld [vmem:[%s172 + $0x460] sm:$0xff]
        %v317 = vld [vmem:[%s172 + $0x468] sm:$0xff]
        %v318 = vld [vmem:[%s172 + $0x470] sm:$0xff]
        %v319 = vld [vmem:[%s172 + $0x478] sm:$0xff]
        %v320 = vld [vmem:[%s172 + $0x480] sm:$0xff]
        %v321 = vld [vmem:[%s172 + $0x488] sm:$0xff]
        %v322 = vld [vmem:[%s172 + $0x490] sm:$0xff]
        %v323 = vld [vmem:[%s172 + $0x498] sm:$0xff]
        %v324 = vld [vmem:[%s172 + $0x4a0] sm:$0xff]
        %v325 = vld [vmem:[%s172 + $0x4a8] sm:$0xff]
        %v326 = vld [vmem:[%s172 + $0x4b0] sm:$0xff]
        %v327 = vld [vmem:[%s172 + $0x4b8] sm:$0xff]
        %v328 = vld [vmem:[%s172 + $0x4c0] sm:$0xff]
        %v329 = vld [vmem:[%s172 + $0x4c8] sm:$0xff]
        %v330 = vld [vmem:[%s172 + $0x4d0] sm:$0xff]
        %v331 = vld [vmem:[%s172 + $0x4d8] sm:$0xff]
        %v332 = vld [vmem:[%s172 + $0x4e0] sm:$0xff]
        %v333 = vld [vmem:[%s172 + $0x4e8] sm:$0xff]
        %v334 = vld [vmem:[%s172 + $0x4f0] sm:$0xff]
        %v335 = vld [vmem:[%s172 + $0x4f8] sm:$0xff]
        %v336 = vld [vmem:[%s172 + $0x500] sm:$0xff]
        %v337 = vld [vmem:[%s172 + $0x508] sm:$0xff]
        %v338 = vld [vmem:[%s172 + $0x510] sm:$0xff]
        %v339 = vld [vmem:[%s172 + $0x518] sm:$0xff]
        %v340 = vld [vmem:[%s172 + $0x520] sm:$0xff]
        %v341 = vld [vmem:[%s172 + $0x528] sm:$0xff]
        %v342 = vld [vmem:[%s172 + $0x530] sm:$0xff]
        %v343 = vld [vmem:[%s172 + $0x538] sm:$0xff]
        %v344 = vld [vmem:[%s172 + $0x540] sm:$0xff]
        %v345 = vld [vmem:[%s172 + $0x548] sm:$0xff]
        %v346 = vld [vmem:[%s172 + $0x550] sm:$0xff]
        %v347 = vld [vmem:[%s172 + $0x558] sm:$0xff]
        %v348 = vld [vmem:[%s172 + $0x560] sm:$0xff]
        %v349 = vld [vmem:[%s172 + $0x568] sm:$0xff]
        %v350 = vld [vmem:[%s172 + $0x570] sm:$0xff]
        %v351 = vld [vmem:[%s172 + $0x578] sm:$0xff]
        %v352 = vld [vmem:[%s172 + $0x580] sm:$0xff]
        %v353 = vld [vmem:[%s172 + $0x588] sm:$0xff]
        %v354 = vld [vmem:[%s172 + $0x590] sm:$0xff]
        %v355 = vld [vmem:[%s172 + $0x598] sm:$0xff]
        %v356 = vld [vmem:[%s172 + $0x5a0] sm:$0xff]
        %v357 = vld [vmem:[%s172 + $0x5a8] sm:$0xff]
        %v358 = vld [vmem:[%s172 + $0x5b0] sm:$0xff]
        %v359 = vld [vmem:[%s172 + $0x5b8] sm:$0xff]
        %v360 = vld [vmem:[%s172 + $0x5c0] sm:$0xff]
        %v361 = vld [vmem:[%s172 + $0x5c8] sm:$0xff]
        %v362 = vld [vmem:[%s172 + $0x5d0] sm:$0xff]
        %v363 = vld [vmem:[%s172 + $0x5d8] sm:$0xff]
        %v364 = vld [vmem:[%s172 + $0x5e0] sm:$0xff]
        %v365 = vld [vmem:[%s172 + $0x5e8] sm:$0xff]
        %v366 = vld [vmem:[%s172 + $0x5f0] sm:$0xff]
        %v367 = vld [vmem:[%s172 + $0x5f8] sm:$0xff]
        %v368 = vld [vmem:[%s172 + $0x600] sm:$0xff]
        %v369 = vld [vmem:[%s172 + $0x608] sm:$0xff]
        %v370 = vld [vmem:[%s172 + $0x610] sm:$0xff]
        %v371 = vld [vmem:[%s172 + $0x618] sm:$0xff]
        %v372 = vld [vmem:[%s172 + $0x620] sm:$0xff]
        %v373 = vld [vmem:[%s172 + $0x628] sm:$0xff]
        %v374 = vld [vmem:[%s172 + $0x630] sm:$0xff]
        %v375 = vld [vmem:[%s172 + $0x638] sm:$0xff]
        %v376 = vld [vmem:[%s172 + $0x640] sm:$0xff]
        %v377 = vld [vmem:[%s172 + $0x648] sm:$0xff]
        %v378 = vld [vmem:[%s172 + $0x650] sm:$0xff]
        %v379 = vld [vmem:[%s172 + $0x658] sm:$0xff]
        %v380 = vld [vmem:[%s172 + $0x660] sm:$0xff]
        %v381 = vld [vmem:[%s172 + $0x668] sm:$0xff]
        %v382 = vld [vmem:[%s172 + $0x670] sm:$0xff]
        %v383 = vld [vmem:[%s172 + $0x678] sm:$0xff]
        %v384 = vld [vmem:[%s172 + $0x680] sm:$0xff]
        %v385 = vld [vmem:[%s172 + $0x688] sm:$0xff]
        %v386 = vld [vmem:[%s172 + $0x690] sm:$0xff]
        %v387 = vld [vmem:[%s172 + $0x698] sm:$0xff]
        %v388 = vld [vmem:[%s172 + $0x6a0] sm:$0xff]
        %v389 = vld [vmem:[%s172 + $0x6a8] sm:$0xff]
        %v390 = vld [vmem:[%s172 + $0x6b0] sm:$0xff]
        %v391 = vld [vmem:[%s172 + $0x6b8] sm:$0xff]
        %v392 = vld [vmem:[%s172 + $0x6c0] sm:$0xff]
        %v393 = vld [vmem:[%s172 + $0x6c8] sm:$0xff]
        %v394 = vld [vmem:[%s172 + $0x6d0] sm:$0xff]
        %v395 = vld [vmem:[%s172 + $0x6d8] sm:$0xff]
        %v396 = vld [vmem:[%s172 + $0x6e0] sm:$0xff]
        %v397 = vld [vmem:[%s172 + $0x6e8] sm:$0xff]
        %v398 = vld [vmem:[%s172 + $0x6f0] sm:$0xff]
        %v399 = vld [vmem:[%s172 + $0x6f8] sm:$0xff]
        %v400 = vld [vmem:[%s1] sm:$0xf]
        %v401 = vld [vmem:[%s1 + $0x4] sm:$0xf]
        %v402 = vld [vmem:[%s1 + $0x8] sm:$0xf]
        %v403 = vld [vmem:[%s1 + $0xc] sm:$0xf]
        %v404 = vld [vmem:[%s1 + $0x10] sm:$0xf]
        %v405 = vld [vmem:[%s1 + $0x14] sm:$0xf]
        %v406 = vld [vmem:[%s1 + $0x18] sm:$0xf]
        %v407 = vld [vmem:[%s1 + $0x1c] sm:$0xf]
        %v408 = vld [vmem:[%s1 + $0x20] sm:$0xf]
        %v409 = vld [vmem:[%s1 + $0x24] sm:$0xf]
        %v410 = vld [vmem:[%s1 + $0x28] sm:$0xf]
        %v411 = vld [vmem:[%s1 + $0x2c] sm:$0xf]
        %v412 = vld [vmem:[%s1 + $0x30] sm:$0xf]
        %v413 = vld [vmem:[%s1 + $0x34] sm:$0xf]
        %v414 = vld [vmem:[%s1 + $0x38] sm:$0xf]
        %v415 = vld [vmem:[%s1 + $0x3c] sm:$0xf]
        %v416 = vld [vmem:[%s1 + $0x40] sm:$0xf]
        %v417 = vld [vmem:[%s1 + $0x44] sm:$0xf]
        %v418 = vld [vmem:[%s1 + $0x48] sm:$0xf]
        %v419 = vld [vmem:[%s1 + $0x4c] sm:$0xf]
        %v420 = vld [vmem:[%s1 + $0x50] sm:$0xf]
        %v421 = vld [vmem:[%s1 + $0x54] sm:$0xf]
        %v422 = vld [vmem:[%s1 + $0x58] sm:$0xf]
        %v423 = vld [vmem:[%s1 + $0x5c] sm:$0xf]
        %v424 = vld [vmem:[%s1 + $0x60] sm:$0xf]
        %v425 = vld [vmem:[%s1 + $0x64] sm:$0xf]
        %v426 = vld [vmem:[%s1 + $0x68] sm:$0xf]
        %v427 = vld [vmem:[%s1 + $0x6c] sm:$0xf]
        %v428 = vld [vmem:[%s1 + $0x70] sm:$0xf]
        %v429 = vld [vmem:[%s1 + $0x74] sm:$0xf]
        %v430 = vld [vmem:[%s1 + $0x78] sm:$0xf]
        %v431 = vld [vmem:[%s1 + $0x7c] sm:$0xf]
        %v432 = vld [vmem:[%s1 + $0x80] sm:$0xf]
        %v433 = vld [vmem:[%s1 + $0x84] sm:$0xf]
        %v434 = vld [vmem:[%s1 + $0x88] sm:$0xf]
        %v435 = vld [vmem:[%s1 + $0x8c] sm:$0xf]
        %v436 = vld [vmem:[%s1 + $0x90] sm:$0xf]
        %v437 = vld [vmem:[%s1 + $0x94] sm:$0xf]
        %v438 = vld [vmem:[%s1 + $0x98] sm:$0xf]
        %v439 = vld [vmem:[%s1 + $0x9c] sm:$0xf]
        %v440 = vld [vmem:[%s1 + $0xa0] sm:$0xf]
        %v441 = vld [vmem:[%s1 + $0xa4] sm:$0xf]
        %v442 = vld [vmem:[%s1 + $0xa8] sm:$0xf]
        %v443 = vld [vmem:[%s1 + $0xac] sm:$0xf]
        %v444 = vld [vmem:[%s1 + $0xb0] sm:$0xf]
        %v445 = vld [vmem:[%s1 + $0xb4] sm:$0xf]
        %v446 = vld [vmem:[%s1 + $0xb8] sm:$0xf]
        %v447 = vld [vmem:[%s1 + $0xbc] sm:$0xf]
        %v448 = vld [vmem:[%s1 + $0xc0] sm:$0xf]
        %v449 = vld [vmem:[%s1 + $0xc4] sm:$0xf]
        %v450 = vld [vmem:[%s1 + $0xc8] sm:$0xf]
        %v451 = vld [vmem:[%s1 + $0xcc] sm:$0xf]
        %v452 = vld [vmem:[%s1 + $0xd0] sm:$0xf]
        %v453 = vld [vmem:[%s1 + $0xd4] sm:$0xf]
        %v454 = vld [vmem:[%s1 + $0xd8] sm:$0xf]
        %v455 = vld [vmem:[%s1 + $0xdc] sm:$0xf]
        %v456 = vld [vmem:[%s1 + $0xe0] sm:$0xf]
        %v457 = vld [vmem:[%s1 + $0xe4] sm:$0xf]
        %v458 = vld [vmem:[%s1 + $0xe8] sm:$0xf]
        %v459 = vld [vmem:[%s1 + $0xec] sm:$0xf]
        %v460 = vld [vmem:[%s1 + $0xf0] sm:$0xf]
        %v461 = vld [vmem:[%s1 + $0xf4] sm:$0xf]
        %v462 = vld [vmem:[%s1 + $0xf8] sm:$0xf]
        %v463 = vld [vmem:[%s1 + $0xfc] sm:$0xf]
        %v464 = vld [vmem:[%s1 + $0x100] sm:$0xf]
        %v465 = vld [vmem:[%s1 + $0x104] sm:$0xf]
        %v466 = vld [vmem:[%s1 + $0x108] sm:$0xf]
        %v467 = vld [vmem:[%s1 + $0x10c] sm:$0xf]
        %v468 = vld [vmem:[%s1 + $0x110] sm:$0xf]
        %v469 = vld [vmem:[%s1 + $0x114] sm:$0xf]
        %v470 = vld [vmem:[%s1 + $0x118] sm:$0xf]
        %v471 = vld [vmem:[%s1 + $0x11c] sm:$0xf]
        %v472 = vld [vmem:[%s1 + $0x120] sm:$0xf]
        %v473 = vld [vmem:[%s1 + $0x124] sm:$0xf]
        %v474 = vld [vmem:[%s1 + $0x128] sm:$0xf]
        %v475 = vld [vmem:[%s1 + $0x12c] sm:$0xf]
        %v476 = vld [vmem:[%s1 + $0x130] sm:$0xf]
        %v477 = vld [vmem:[%s1 + $0x134] sm:$0xf]
        %v478 = vld [vmem:[%s1 + $0x138] sm:$0xf]
        %v479 = vld [vmem:[%s1 + $0x13c] sm:$0xf]
        %v480 = vld [vmem:[%s1 + $0x140] sm:$0xf]
        %v481 = vld [vmem:[%s1 + $0x144] sm:$0xf]
        %v482 = vld [vmem:[%s1 + $0x148] sm:$0xf]
        %v483 = vld [vmem:[%s1 + $0x14c] sm:$0xf]
        %v484 = vld [vmem:[%s1 + $0x150] sm:$0xf]
        %v485 = vld [vmem:[%s1 + $0x154] sm:$0xf]
        %v486 = vld [vmem:[%s1 + $0x158] sm:$0xf]
        %v487 = vld [vmem:[%s1 + $0x15c] sm:$0xf]
        %v488 = vld [vmem:[%s1 + $0x160] sm:$0xf]
        %v489 = vld [vmem:[%s1 + $0x164] sm:$0xf]
        %v490 = vld [vmem:[%s1 + $0x168] sm:$0xf]
        %v491 = vld [vmem:[%s1 + $0x16c] sm:$0xf]
        %v492 = vld [vmem:[%s1 + $0x170] sm:$0xf]
        %v493 = vld [vmem:[%s1 + $0x174] sm:$0xf]
        %v494 = vld [vmem:[%s1 + $0x178] sm:$0xf]
        %v495 = vld [vmem:[%s1 + $0x17c] sm:$0xf]
        %v496 = vld [vmem:[%s1 + $0x180] sm:$0xf]
        %v497 = vld [vmem:[%s1 + $0x184] sm:$0xf]
        %v498 = vld [vmem:[%s1 + $0x188] sm:$0xf]
        %v499 = vld [vmem:[%s1 + $0x18c] sm:$0xf]
        %v500 = vld [vmem:[%s1 + $0x190] sm:$0xf]
        %v501 = vld [vmem:[%s1 + $0x194] sm:$0xf]
        %v502 = vld [vmem:[%s1 + $0x198] sm:$0xf]
        %v503 = vld [vmem:[%s1 + $0x19c] sm:$0xf]
        %v504 = vld [vmem:[%s1 + $0x1a0] sm:$0xf]
        %v505 = vld [vmem:[%s1 + $0x1a4] sm:$0xf]
        %v506 = vld [vmem:[%s1 + $0x1a8] sm:$0xf]
        %v507 = vld [vmem:[%s1 + $0x1ac] sm:$0xf]
        %v508 = vld [vmem:[%s1 + $0x1b0] sm:$0xf]
        %v509 = vld [vmem:[%s1 + $0x1b4] sm:$0xf]
        %v510 = vld [vmem:[%s1 + $0x1b8] sm:$0xf]
        %v511 = vld [vmem:[%s1 + $0x1bc] sm:$0xf]
        %v512 = vld [vmem:[%s1 + $0x1c0] sm:$0xf]
        %v513 = vld [vmem:[%s1 + $0x1c4] sm:$0xf]
        %v514 = vld [vmem:[%s1 + $0x1c8] sm:$0xf]
        %v515 = vld [vmem:[%s1 + $0x1cc] sm:$0xf]
        %v516 = vld [vmem:[%s1 + $0x1d0] sm:$0xf]
        %v517 = vld [vmem:[%s1 + $0x1d4] sm:$0xf]
        %v518 = vld [vmem:[%s1 + $0x1d8] sm:$0xf]
        %v519 = vld [vmem:[%s1 + $0x1dc] sm:$0xf]
        %v520 = vld [vmem:[%s1 + $0x1e0] sm:$0xf]
        %v521 = vld [vmem:[%s1 + $0x1e4] sm:$0xf]
        %v522 = vld [vmem:[%s1 + $0x1e8] sm:$0xf]
        %v523 = vld [vmem:[%s1 + $0x1ec] sm:$0xf]
        %v524 = vld [vmem:[%s1 + $0x1f0] sm:$0xf]
        %v525 = vld [vmem:[%s1 + $0x1f4] sm:$0xf]
        %v526 = vld [vmem:[%s1 + $0x1f8] sm:$0xf]
        %v527 = vld [vmem:[%s1 + $0x1fc] sm:$0xf]
        %v528 = vld [vmem:[%s1 + $0x200] sm:$0xf]
        %v529 = vld [vmem:[%s1 + $0x204] sm:$0xf]
        %v530 = vld [vmem:[%s1 + $0x208] sm:$0xf]
        %v531 = vld [vmem:[%s1 + $0x20c] sm:$0xf]
        %v532 = vld [vmem:[%s1 + $0x210] sm:$0xf]
        %v533 = vld [vmem:[%s1 + $0x214] sm:$0xf]
        %v534 = vld [vmem:[%s1 + $0x218] sm:$0xf]
        %v535 = vld [vmem:[%s1 + $0x21c] sm:$0xf]
        %v536 = vld [vmem:[%s1 + $0x220] sm:$0xf]
        %v537 = vld [vmem:[%s1 + $0x224] sm:$0xf]
        %v538 = vld [vmem:[%s1 + $0x228] sm:$0xf]
        %v539 = vld [vmem:[%s1 + $0x22c] sm:$0xf]
        %v540 = vld [vmem:[%s1 + $0x230] sm:$0xf]
        %v541 = vld [vmem:[%s1 + $0x234] sm:$0xf]
        %v542 = vld [vmem:[%s1 + $0x238] sm:$0xf]
        %v543 = vld [vmem:[%s1 + $0x23c] sm:$0xf]
        %v544 = vld [vmem:[%s1 + $0x240] sm:$0xf]
        %v545 = vld [vmem:[%s1 + $0x244] sm:$0xf]
        %v546 = vld [vmem:[%s1 + $0x248] sm:$0xf]
        %v547 = vld [vmem:[%s1 + $0x24c] sm:$0xf]
        %v548 = vld [vmem:[%s1 + $0x250] sm:$0xf]
        %v549 = vld [vmem:[%s1 + $0x254] sm:$0xf]
        %v550 = vld [vmem:[%s1 + $0x258] sm:$0xf]
        %v551 = vld [vmem:[%s1 + $0x25c] sm:$0xf]
        %v552 = vld [vmem:[%s1 + $0x260] sm:$0xf]
        %v553 = vld [vmem:[%s1 + $0x264] sm:$0xf]
        %v554 = vld [vmem:[%s1 + $0x268] sm:$0xf]
        %v555 = vld [vmem:[%s1 + $0x26c] sm:$0xf]
        %v556 = vld [vmem:[%s1 + $0x270] sm:$0xf]
        %v557 = vld [vmem:[%s1 + $0x274] sm:$0xf]
        %v558 = vld [vmem:[%s1 + $0x278] sm:$0xf]
        %v559 = vld [vmem:[%s1 + $0x27c] sm:$0xf]
        %v560 = vld [vmem:[%s1 + $0x280] sm:$0xf]
        %v561 = vld [vmem:[%s1 + $0x284] sm:$0xf]
        %v562 = vld [vmem:[%s1 + $0x288] sm:$0xf]
        %v563 = vld [vmem:[%s1 + $0x28c] sm:$0xf]
        %v564 = vld [vmem:[%s1 + $0x290] sm:$0xf]
        %v565 = vld [vmem:[%s1 + $0x294] sm:$0xf]
        %v566 = vld [vmem:[%s1 + $0x298] sm:$0xf]
        %v567 = vld [vmem:[%s1 + $0x29c] sm:$0xf]
        %v568 = vld [vmem:[%s1 + $0x2a0] sm:$0xf]
        %v569 = vld [vmem:[%s1 + $0x2a4] sm:$0xf]
        %v570 = vld [vmem:[%s1 + $0x2a8] sm:$0xf]
        %v571 = vld [vmem:[%s1 + $0x2ac] sm:$0xf]
        %v572 = vld [vmem:[%s1 + $0x2b0] sm:$0xf]
        %v573 = vld [vmem:[%s1 + $0x2b4] sm:$0xf]
        %v574 = vld [vmem:[%s1 + $0x2b8] sm:$0xf]
        %v575 = vld [vmem:[%s1 + $0x2bc] sm:$0xf]
        %v576 = vld [vmem:[%s1 + $0x2c0] sm:$0xf]
        %v577 = vld [vmem:[%s1 + $0x2c4] sm:$0xf]
        %v578 = vld [vmem:[%s1 + $0x2c8] sm:$0xf]
        %v579 = vld [vmem:[%s1 + $0x2cc] sm:$0xf]
        %v580 = vld [vmem:[%s1 + $0x2d0] sm:$0xf]
        %v581 = vld [vmem:[%s1 + $0x2d4] sm:$0xf]
        %v582 = vld [vmem:[%s1 + $0x2d8] sm:$0xf]
        %v583 = vld [vmem:[%s1 + $0x2dc] sm:$0xf]
        %v584 = vld [vmem:[%s1 + $0x2e0] sm:$0xf]
        %v585 = vld [vmem:[%s1 + $0x2e4] sm:$0xf]
        %v586 = vld [vmem:[%s1 + $0x2e8] sm:$0xf]
        %v587 = vld [vmem:[%s1 + $0x2ec] sm:$0xf]
        %v588 = vld [vmem:[%s1 + $0x2f0] sm:$0xf]
        %v589 = vld [vmem:[%s1 + $0x2f4] sm:$0xf]
        %v590 = vld [vmem:[%s1 + $0x2f8] sm:$0xf]
        %v591 = vld [vmem:[%s1 + $0x2fc] sm:$0xf]
        %v592 = vld [vmem:[%s1 + $0x300] sm:$0xf]
        %v593 = vld [vmem:[%s1 + $0x304] sm:$0xf]
        %v594 = vld [vmem:[%s1 + $0x308] sm:$0xf]
        %v595 = vld [vmem:[%s1 + $0x30c] sm:$0xf]
        %v596 = vld [vmem:[%s1 + $0x310] sm:$0xf]
        %v597 = vld [vmem:[%s1 + $0x314] sm:$0xf]
        %v598 = vld [vmem:[%s1 + $0x318] sm:$0xf]
        %v599 = vld [vmem:[%s1 + $0x31c] sm:$0xf]
        %v600 = vld [vmem:[%s1 + $0x320] sm:$0xf]
        %v601 = vld [vmem:[%s1 + $0x324] sm:$0xf]
        %v602 = vld [vmem:[%s1 + $0x328] sm:$0xf]
        %v603 = vld [vmem:[%s1 + $0x32c] sm:$0xf]
        %v604 = vld [vmem:[%s1 + $0x330] sm:$0xf]
        %v605 = vld [vmem:[%s1 + $0x334] sm:$0xf]
        %v606 = vld [vmem:[%s1 + $0x338] sm:$0xf]
        %v607 = vld [vmem:[%s1 + $0x33c] sm:$0xf]
        %v608 = vld [vmem:[%s1 + $0x340] sm:$0xf]
        %v609 = vld [vmem:[%s1 + $0x344] sm:$0xf]
        %v610 = vld [vmem:[%s1 + $0x348] sm:$0xf]
        %v611 = vld [vmem:[%s1 + $0x34c] sm:$0xf]
        %v612 = vld [vmem:[%s1 + $0x350] sm:$0xf]
        %v613 = vld [vmem:[%s1 + $0x354] sm:$0xf]
        %v614 = vld [vmem:[%s1 + $0x358] sm:$0xf]
        %v615 = vld [vmem:[%s1 + $0x35c] sm:$0xf]
        %v616 = vld [vmem:[%s2] sm:$0x1]
        %v618 = vlaneseq
        %v619 = vshrl.u32 %v618, 7
        %v620 = vsub.s32 0, %v619
        %v621 = vrot.slane %v616, %v620
        %v847 = vunpack.c.l.b16 %v176
        %v848 = vunpack.c.h.b16 %v176
        %v849 = vunpack.c.l.b16 %v177
        %v850 = vunpack.c.h.b16 %v177
        %v851 = vunpack.c.l.b16 %v178
        %v852 = vunpack.c.h.b16 %v178
        %v853 = vunpack.c.l.b16 %v179
        %v854 = vunpack.c.h.b16 %v179
        %v855 = vunpack.c.l.b16 %v180
        %v856 = vunpack.c.h.b16 %v180
        %v857 = vunpack.c.l.b16 %v181
        %v858 = vunpack.c.h.b16 %v181
        %v859 = vunpack.c.l.b16 %v182
        %v860 = vunpack.c.h.b16 %v182
        %v861 = vunpack.c.l.b16 %v183
        %v862 = vunpack.c.h.b16 %v183
        %v863 = vunpack.c.l.b16 %v184
        %v864 = vunpack.c.h.b16 %v184
        %v865 = vunpack.c.l.b16 %v185
        %v866 = vunpack.c.h.b16 %v185
        %v867 = vunpack.c.l.b16 %v186
        %v868 = vunpack.c.h.b16 %v186
        %v869 = vunpack.c.l.b16 %v187
        %v870 = vunpack.c.h.b16 %v187
        %v871 = vunpack.c.l.b16 %v188
        %v872 = vunpack.c.h.b16 %v188
        %v873 = vunpack.c.l.b16 %v189
        %v874 = vunpack.c.h.b16 %v189
        %v875 = vunpack.c.l.b16 %v190
        %v876 = vunpack.c.h.b16 %v190
        %v877 = vunpack.c.l.b16 %v191
        %v878 = vunpack.c.h.b16 %v191
        %v879 = vunpack.c.l.b16 %v192
        %v880 = vunpack.c.h.b16 %v192
        %v881 = vunpack.c.l.b16 %v193
        %v882 = vunpack.c.h.b16 %v193
        %v883 = vunpack.c.l.b16 %v194
        %v884 = vunpack.c.h.b16 %v194
        %v885 = vunpack.c.l.b16 %v195
        %v886 = vunpack.c.h.b16 %v195
        %v887 = vunpack.c.l.b16 %v196
        %v888 = vunpack.c.h.b16 %v196
        %v889 = vunpack.c.l.b16 %v197
        %v890 = vunpack.c.h.b16 %v197
        %v891 = vunpack.c.l.b16 %v198
        %v892 = vunpack.c.h.b16 %v198
        %v893 = vunpack.c.l.b16 %v199
        %v894 = vunpack.c.h.b16 %v199
        %v895 = vunpack.c.l.b16 %v200
        %v896 = vunpack.c.h.b16 %v200
        %v897 = vunpack.c.l.b16 %v201
        %v898 = vunpack.c.h.b16 %v201
        %v899 = vunpack.c.l.b16 %v202
        %v900 = vunpack.c.h.b16 %v202
        %v901 = vunpack.c.l.b16 %v203
        %v902 = vunpack.c.h.b16 %v203
        %v903 = vunpack.c.l.b16 %v204
        %v904 = vunpack.c.h.b16 %v204
        %v905 = vunpack.c.l.b16 %v205
        %v906 = vunpack.c.h.b16 %v205
        %v907 = vunpack.c.l.b16 %v206
        %v908 = vunpack.c.h.b16 %v206
        %v909 = vunpack.c.l.b16 %v207
        %v910 = vunpack.c.h.b16 %v207
        %v911 = vunpack.c.l.b16 %v208
        %v912 = vunpack.c.h.b16 %v208
        %v913 = vunpack.c.l.b16 %v209
        %v914 = vunpack.c.h.b16 %v209
        %v915 = vunpack.c.l.b16 %v210
        %v916 = vunpack.c.h.b16 %v210
        %v917 = vunpack.c.l.b16 %v211
        %v918 = vunpack.c.h.b16 %v211
        %v919 = vunpack.c.l.b16 %v212
        %v920 = vunpack.c.h.b16 %v212
        %v921 = vunpack.c.l.b16 %v213
        %v922 = vunpack.c.h.b16 %v213
        %v923 = vunpack.c.l.b16 %v214
        %v924 = vunpack.c.h.b16 %v214
        %v925 = vunpack.c.l.b16 %v215
        %v926 = vunpack.c.h.b16 %v215
        %v927 = vunpack.c.l.b16 %v216
        %v928 = vunpack.c.h.b16 %v216
        %v929 = vunpack.c.l.b16 %v217
        %v930 = vunpack.c.h.b16 %v217
        %v931 = vunpack.c.l.b16 %v218
        %v932 = vunpack.c.h.b16 %v218
        %v933 = vunpack.c.l.b16 %v219
        %v934 = vunpack.c.h.b16 %v219
        %v935 = vunpack.c.l.b16 %v220
        %v936 = vunpack.c.h.b16 %v220
        %v937 = vunpack.c.l.b16 %v221
        %v938 = vunpack.c.h.b16 %v221
        %v939 = vunpack.c.l.b16 %v222
        %v940 = vunpack.c.h.b16 %v222
        %v941 = vunpack.c.l.b16 %v223
        %v942 = vunpack.c.h.b16 %v223
        %v943 = vunpack.c.l.b16 %v224
        %v944 = vunpack.c.h.b16 %v224
        %v945 = vunpack.c.l.b16 %v225
        %v946 = vunpack.c.h.b16 %v225
        %v947 = vunpack.c.l.b16 %v226
        %v948 = vunpack.c.h.b16 %v226
        %v949 = vunpack.c.l.b16 %v227
        %v950 = vunpack.c.h.b16 %v227
        %v951 = vunpack.c.l.b16 %v228
        %v952 = vunpack.c.h.b16 %v228
        %v953 = vunpack.c.l.b16 %v229
        %v954 = vunpack.c.h.b16 %v229
        %v955 = vunpack.c.l.b16 %v230
        %v956 = vunpack.c.h.b16 %v230
        %v957 = vunpack.c.l.b16 %v231
        %v958 = vunpack.c.h.b16 %v231
        %v959 = vunpack.c.l.b16 %v232
        %v960 = vunpack.c.h.b16 %v232
        %v961 = vunpack.c.l.b16 %v233
        %v962 = vunpack.c.h.b16 %v233
        %v963 = vunpack.c.l.b16 %v234
        %v964 = vunpack.c.h.b16 %v234
        %v965 = vunpack.c.l.b16 %v235
        %v966 = vunpack.c.h.b16 %v235
        %v967 = vunpack.c.l.b16 %v236
        %v968 = vunpack.c.h.b16 %v236
        %v969 = vunpack.c.l.b16 %v237
        %v970 = vunpack.c.h.b16 %v237
        %v971 = vunpack.c.l.b16 %v238
        %v972 = vunpack.c.h.b16 %v238
        %v973 = vunpack.c.l.b16 %v239
        %v974 = vunpack.c.h.b16 %v239
        %v975 = vunpack.c.l.b16 %v240
        %v976 = vunpack.c.h.b16 %v240
        %v977 = vunpack.c.l.b16 %v241
        %v978 = vunpack.c.h.b16 %v241
        %v979 = vunpack.c.l.b16 %v242
        %v980 = vunpack.c.h.b16 %v242
        %v981 = vunpack.c.l.b16 %v243
        %v982 = vunpack.c.h.b16 %v243
        %v983 = vunpack.c.l.b16 %v244
        %v984 = vunpack.c.h.b16 %v244
        %v985 = vunpack.c.l.b16 %v245
        %v986 = vunpack.c.h.b16 %v245
        %v987 = vunpack.c.l.b16 %v246
        %v988 = vunpack.c.h.b16 %v246
        %v989 = vunpack.c.l.b16 %v247
        %v990 = vunpack.c.h.b16 %v247
        %v991 = vunpack.c.l.b16 %v248
        %v992 = vunpack.c.h.b16 %v248
        %v993 = vunpack.c.l.b16 %v249
        %v994 = vunpack.c.h.b16 %v249
        %v995 = vunpack.c.l.b16 %v250
        %v996 = vunpack.c.h.b16 %v250
        %v997 = vunpack.c.l.b16 %v251
        %v998 = vunpack.c.h.b16 %v251
        %v999 = vunpack.c.l.b16 %v252
        %v1000 = vunpack.c.h.b16 %v252
        %v1001 = vunpack.c.l.b16 %v253
        %v1002 = vunpack.c.h.b16 %v253
        %v1003 = vunpack.c.l.b16 %v254
        %v1004 = vunpack.c.h.b16 %v254
        %v1005 = vunpack.c.l.b16 %v255
        %v1006 = vunpack.c.h.b16 %v255
        %v1007 = vunpack.c.l.b16 %v256
        %v1008 = vunpack.c.h.b16 %v256
        %v1009 = vunpack.c.l.b16 %v257
        %v1010 = vunpack.c.h.b16 %v257
        %v1011 = vunpack.c.l.b16 %v258
        %v1012 = vunpack.c.h.b16 %v258
        %v1013 = vunpack.c.l.b16 %v259
        %v1014 = vunpack.c.h.b16 %v259
        %v1015 = vunpack.c.l.b16 %v260
        %v1016 = vunpack.c.h.b16 %v260
        %v1017 = vunpack.c.l.b16 %v261
        %v1018 = vunpack.c.h.b16 %v261
        %v1019 = vunpack.c.l.b16 %v262
        %v1020 = vunpack.c.h.b16 %v262
        %v1021 = vunpack.c.l.b16 %v263
        %v1022 = vunpack.c.h.b16 %v263
        %v1023 = vunpack.c.l.b16 %v264
        %v1024 = vunpack.c.h.b16 %v264
        %v1025 = vunpack.c.l.b16 %v265
        %v1026 = vunpack.c.h.b16 %v265
        %v1027 = vunpack.c.l.b16 %v266
        %v1028 = vunpack.c.h.b16 %v266
        %v1029 = vunpack.c.l.b16 %v267
        %v1030 = vunpack.c.h.b16 %v267
        %v1031 = vunpack.c.l.b16 %v268
        %v1032 = vunpack.c.h.b16 %v268
        %v1033 = vunpack.c.l.b16 %v269
        %v1034 = vunpack.c.h.b16 %v269
        %v1035 = vunpack.c.l.b16 %v270
        %v1036 = vunpack.c.h.b16 %v270
        %v1037 = vunpack.c.l.b16 %v271
        %v1038 = vunpack.c.h.b16 %v271
        %v1039 = vunpack.c.l.b16 %v272
        %v1040 = vunpack.c.h.b16 %v272
        %v1041 = vunpack.c.l.b16 %v273
        %v1042 = vunpack.c.h.b16 %v273
        %v1043 = vunpack.c.l.b16 %v274
        %v1044 = vunpack.c.h.b16 %v274
        %v1045 = vunpack.c.l.b16 %v275
        %v1046 = vunpack.c.h.b16 %v275
        %v1047 = vunpack.c.l.b16 %v276
        %v1048 = vunpack.c.h.b16 %v276
        %v1049 = vunpack.c.l.b16 %v277
        %v1050 = vunpack.c.h.b16 %v277
        %v1051 = vunpack.c.l.b16 %v278
        %v1052 = vunpack.c.h.b16 %v278
        %v1053 = vunpack.c.l.b16 %v279
        %v1054 = vunpack.c.h.b16 %v279
        %v1055 = vunpack.c.l.b16 %v280
        %v1056 = vunpack.c.h.b16 %v280
        %v1057 = vunpack.c.l.b16 %v281
        %v1058 = vunpack.c.h.b16 %v281
        %v1059 = vunpack.c.l.b16 %v282
        %v1060 = vunpack.c.h.b16 %v282
        %v1061 = vunpack.c.l.b16 %v283
        %v1062 = vunpack.c.h.b16 %v283
        %v1063 = vunpack.c.l.b16 %v284
        %v1064 = vunpack.c.h.b16 %v284
        %v1065 = vunpack.c.l.b16 %v285
        %v1066 = vunpack.c.h.b16 %v285
        %v1067 = vunpack.c.l.b16 %v286
        %v1068 = vunpack.c.h.b16 %v286
        %v1069 = vunpack.c.l.b16 %v287
        %v1070 = vunpack.c.h.b16 %v287
        %v1071 = vunpack.c.l.b16 %v288
        %v1072 = vunpack.c.h.b16 %v288
        %v1073 = vunpack.c.l.b16 %v289
        %v1074 = vunpack.c.h.b16 %v289
        %v1075 = vunpack.c.l.b16 %v290
        %v1076 = vunpack.c.h.b16 %v290
        %v1077 = vunpack.c.l.b16 %v291
        %v1078 = vunpack.c.h.b16 %v291
        %v1079 = vunpack.c.l.b16 %v292
        %v1080 = vunpack.c.h.b16 %v292
        %v1081 = vunpack.c.l.b16 %v293
        %v1082 = vunpack.c.h.b16 %v293
        %v1083 = vunpack.c.l.b16 %v294
        %v1084 = vunpack.c.h.b16 %v294
        %v1085 = vunpack.c.l.b16 %v295
        %v1086 = vunpack.c.h.b16 %v295
        %v1087 = vunpack.c.l.b16 %v296
        %v1088 = vunpack.c.h.b16 %v296
        %v1089 = vunpack.c.l.b16 %v297
        %v1090 = vunpack.c.h.b16 %v297
        %v1091 = vunpack.c.l.b16 %v298
        %v1092 = vunpack.c.h.b16 %v298
        %v1093 = vunpack.c.l.b16 %v299
        %v1094 = vunpack.c.h.b16 %v299
        %v1095 = vunpack.c.l.b16 %v300
        %v1096 = vunpack.c.h.b16 %v300
        %v1097 = vunpack.c.l.b16 %v301
        %v1098 = vunpack.c.h.b16 %v301
        %v1099 = vunpack.c.l.b16 %v302
        %v1100 = vunpack.c.h.b16 %v302
        %v1101 = vunpack.c.l.b16 %v303
        %v1102 = vunpack.c.h.b16 %v303
        %v1103 = vunpack.c.l.b16 %v304
        %v1104 = vunpack.c.h.b16 %v304
        %v1105 = vunpack.c.l.b16 %v305
        %v1106 = vunpack.c.h.b16 %v305
        %v1107 = vunpack.c.l.b16 %v306
        %v1108 = vunpack.c.h.b16 %v306
        %v1109 = vunpack.c.l.b16 %v307
        %v1110 = vunpack.c.h.b16 %v307
        %v1111 = vunpack.c.l.b16 %v308
        %v1112 = vunpack.c.h.b16 %v308
        %v1113 = vunpack.c.l.b16 %v309
        %v1114 = vunpack.c.h.b16 %v309
        %v1115 = vunpack.c.l.b16 %v310
        %v1116 = vunpack.c.h.b16 %v310
        %v1117 = vunpack.c.l.b16 %v311
        %v1118 = vunpack.c.h.b16 %v311
        %v1119 = vunpack.c.l.b16 %v312
        %v1120 = vunpack.c.h.b16 %v312
        %v1121 = vunpack.c.l.b16 %v313
        %v1122 = vunpack.c.h.b16 %v313
        %v1123 = vunpack.c.l.b16 %v314
        %v1124 = vunpack.c.h.b16 %v314
        %v1125 = vunpack.c.l.b16 %v315
        %v1126 = vunpack.c.h.b16 %v315
        %v1127 = vunpack.c.l.b16 %v316
        %v1128 = vunpack.c.h.b16 %v316
        %v1129 = vunpack.c.l.b16 %v317
        %v1130 = vunpack.c.h.b16 %v317
        %v1131 = vunpack.c.l.b16 %v318
        %v1132 = vunpack.c.h.b16 %v318
        %v1133 = vunpack.c.l.b16 %v319
        %v1134 = vunpack.c.h.b16 %v319
        %v1135 = vunpack.c.l.b16 %v320
        %v1136 = vunpack.c.h.b16 %v320
        %v1137 = vunpack.c.l.b16 %v321
        %v1138 = vunpack.c.h.b16 %v321
        %v1139 = vunpack.c.l.b16 %v322
        %v1140 = vunpack.c.h.b16 %v322
        %v1141 = vunpack.c.l.b16 %v323
        %v1142 = vunpack.c.h.b16 %v323
        %v1143 = vunpack.c.l.b16 %v324
        %v1144 = vunpack.c.h.b16 %v324
        %v1145 = vunpack.c.l.b16 %v325
        %v1146 = vunpack.c.h.b16 %v325
        %v1147 = vunpack.c.l.b16 %v326
        %v1148 = vunpack.c.h.b16 %v326
        %v1149 = vunpack.c.l.b16 %v327
        %v1150 = vunpack.c.h.b16 %v327
        %v1151 = vunpack.c.l.b16 %v328
        %v1152 = vunpack.c.h.b16 %v328
        %v1153 = vunpack.c.l.b16 %v329
        %v1154 = vunpack.c.h.b16 %v329
        %v1155 = vunpack.c.l.b16 %v330
        %v1156 = vunpack.c.h.b16 %v330
        %v1157 = vunpack.c.l.b16 %v331
        %v1158 = vunpack.c.h.b16 %v331
        %v1159 = vunpack.c.l.b16 %v332
        %v1160 = vunpack.c.h.b16 %v332
        %v1161 = vunpack.c.l.b16 %v333
        %v1162 = vunpack.c.h.b16 %v333
        %v1163 = vunpack.c.l.b16 %v334
        %v1164 = vunpack.c.h.b16 %v334
        %v1165 = vunpack.c.l.b16 %v335
        %v1166 = vunpack.c.h.b16 %v335
        %v1167 = vunpack.c.l.b16 %v336
        %v1168 = vunpack.c.h.b16 %v336
        %v1169 = vunpack.c.l.b16 %v337
        %v1170 = vunpack.c.h.b16 %v337
        %v1171 = vunpack.c.l.b16 %v338
        %v1172 = vunpack.c.h.b16 %v338
        %v1173 = vunpack.c.l.b16 %v339
        %v1174 = vunpack.c.h.b16 %v339
        %v1175 = vunpack.c.l.b16 %v340
        %v1176 = vunpack.c.h.b16 %v340
        %v1177 = vunpack.c.l.b16 %v341
        %v1178 = vunpack.c.h.b16 %v341
        %v1179 = vunpack.c.l.b16 %v342
        %v1180 = vunpack.c.h.b16 %v342
        %v1181 = vunpack.c.l.b16 %v343
        %v1182 = vunpack.c.h.b16 %v343
        %v1183 = vunpack.c.l.b16 %v344
        %v1184 = vunpack.c.h.b16 %v344
        %v1185 = vunpack.c.l.b16 %v345
        %v1186 = vunpack.c.h.b16 %v345
        %v1187 = vunpack.c.l.b16 %v346
        %v1188 = vunpack.c.h.b16 %v346
        %v1189 = vunpack.c.l.b16 %v347
        %v1190 = vunpack.c.h.b16 %v347
        %v1191 = vunpack.c.l.b16 %v348
        %v1192 = vunpack.c.h.b16 %v348
        %v1193 = vunpack.c.l.b16 %v349
        %v1194 = vunpack.c.h.b16 %v349
        %v1195 = vunpack.c.l.b16 %v350
        %v1196 = vunpack.c.h.b16 %v350
        %v1197 = vunpack.c.l.b16 %v351
        %v1198 = vunpack.c.h.b16 %v351
        %v1199 = vunpack.c.l.b16 %v352
        %v1200 = vunpack.c.h.b16 %v352
        %v1201 = vunpack.c.l.b16 %v353
        %v1202 = vunpack.c.h.b16 %v353
        %v1203 = vunpack.c.l.b16 %v354
        %v1204 = vunpack.c.h.b16 %v354
        %v1205 = vunpack.c.l.b16 %v355
        %v1206 = vunpack.c.h.b16 %v355
        %v1207 = vunpack.c.l.b16 %v356
        %v1208 = vunpack.c.h.b16 %v356
        %v1209 = vunpack.c.l.b16 %v357
        %v1210 = vunpack.c.h.b16 %v357
        %v1211 = vunpack.c.l.b16 %v358
        %v1212 = vunpack.c.h.b16 %v358
        %v1213 = vunpack.c.l.b16 %v359
        %v1214 = vunpack.c.h.b16 %v359
        %v1215 = vunpack.c.l.b16 %v360
        %v1216 = vunpack.c.h.b16 %v360
        %v1217 = vunpack.c.l.b16 %v361
        %v1218 = vunpack.c.h.b16 %v361
        %v1219 = vunpack.c.l.b16 %v362
        %v1220 = vunpack.c.h.b16 %v362
        %v1221 = vunpack.c.l.b16 %v363
        %v1222 = vunpack.c.h.b16 %v363
        %v1223 = vunpack.c.l.b16 %v364
        %v1224 = vunpack.c.h.b16 %v364
        %v1225 = vunpack.c.l.b16 %v365
        %v1226 = vunpack.c.h.b16 %v365
        %v1227 = vunpack.c.l.b16 %v366
        %v1228 = vunpack.c.h.b16 %v366
        %v1229 = vunpack.c.l.b16 %v367
        %v1230 = vunpack.c.h.b16 %v367
        %v1231 = vunpack.c.l.b16 %v368
        %v1232 = vunpack.c.h.b16 %v368
        %v1233 = vunpack.c.l.b16 %v369
        %v1234 = vunpack.c.h.b16 %v369
        %v1235 = vunpack.c.l.b16 %v370
        %v1236 = vunpack.c.h.b16 %v370
        %v1237 = vunpack.c.l.b16 %v371
        %v1238 = vunpack.c.h.b16 %v371
        %v1239 = vunpack.c.l.b16 %v372
        %v1240 = vunpack.c.h.b16 %v372
        %v1241 = vunpack.c.l.b16 %v373
        %v1242 = vunpack.c.h.b16 %v373
        %v1243 = vunpack.c.l.b16 %v374
        %v1244 = vunpack.c.h.b16 %v374
        %v1245 = vunpack.c.l.b16 %v375
        %v1246 = vunpack.c.h.b16 %v375
        %v1247 = vunpack.c.l.b16 %v376
        %v1248 = vunpack.c.h.b16 %v376
        %v1249 = vunpack.c.l.b16 %v377
        %v1250 = vunpack.c.h.b16 %v377
        %v1251 = vunpack.c.l.b16 %v378
        %v1252 = vunpack.c.h.b16 %v378
        %v1253 = vunpack.c.l.b16 %v379
        %v1254 = vunpack.c.h.b16 %v379
        %v1255 = vunpack.c.l.b16 %v380
        %v1256 = vunpack.c.h.b16 %v380
        %v1257 = vunpack.c.l.b16 %v381
        %v1258 = vunpack.c.h.b16 %v381
        %v1259 = vunpack.c.l.b16 %v382
        %v1260 = vunpack.c.h.b16 %v382
        %v1261 = vunpack.c.l.b16 %v383
        %v1262 = vunpack.c.h.b16 %v383
        %v1263 = vunpack.c.l.b16 %v384
        %v1264 = vunpack.c.h.b16 %v384
        %v1265 = vunpack.c.l.b16 %v385
        %v1266 = vunpack.c.h.b16 %v385
        %v1267 = vunpack.c.l.b16 %v386
        %v1268 = vunpack.c.h.b16 %v386
        %v1269 = vunpack.c.l.b16 %v387
        %v1270 = vunpack.c.h.b16 %v387
        %v1271 = vunpack.c.l.b16 %v388
        %v1272 = vunpack.c.h.b16 %v388
        %v1273 = vunpack.c.l.b16 %v389
        %v1274 = vunpack.c.h.b16 %v389
        %v1275 = vunpack.c.l.b16 %v390
        %v1276 = vunpack.c.h.b16 %v390
        %v1277 = vunpack.c.l.b16 %v391
        %v1278 = vunpack.c.h.b16 %v391
        %v1279 = vunpack.c.l.b16 %v392
        %v1280 = vunpack.c.h.b16 %v392
        %v1281 = vunpack.c.l.b16 %v393
        %v1282 = vunpack.c.h.b16 %v393
        %v1283 = vunpack.c.l.b16 %v394
        %v1284 = vunpack.c.h.b16 %v394
        %v1285 = vunpack.c.l.b16 %v395
        %v1286 = vunpack.c.h.b16 %v395
        %v1287 = vunpack.c.l.b16 %v396
        %v1288 = vunpack.c.h.b16 %v396
        %v1289 = vunpack.c.l.b16 %v397
        %v1290 = vunpack.c.h.b16 %v397
        %v1291 = vunpack.c.l.b16 %v398
        %v1292 = vunpack.c.h.b16 %v398
        %v1293 = vunpack.c.l.b16 %v399
        %v1294 = vunpack.c.h.b16 %v399
        %v1295 = vpack.c.b16 %v861, %v847
        %v1296 = vpack.c.b16 %v862, %v848
        %v1297 = vpack.c.b16 %v863, %v849
        %v1298 = vpack.c.b16 %v864, %v850
        %v1299 = vpack.c.b16 %v865, %v851
        %v1300 = vpack.c.b16 %v866, %v852
        %v1301 = vpack.c.b16 %v867, %v853
        %v1302 = vpack.c.b16 %v868, %v854
        %v1303 = vpack.c.b16 %v869, %v855
        %v1304 = vpack.c.b16 %v870, %v856
        %v1305 = vpack.c.b16 %v871, %v857
        %v1306 = vpack.c.b16 %v872, %v858
        %v1307 = vpack.c.b16 %v873, %v859
        %v1308 = vpack.c.b16 %v874, %v860
        %v1309 = vpack.c.b16 %v889, %v875
        %v1310 = vpack.c.b16 %v890, %v876
        %v1311 = vpack.c.b16 %v891, %v877
        %v1312 = vpack.c.b16 %v892, %v878
        %v1313 = vpack.c.b16 %v893, %v879
        %v1314 = vpack.c.b16 %v894, %v880
        %v1315 = vpack.c.b16 %v895, %v881
        %v1316 = vpack.c.b16 %v896, %v882
        %v1317 = vpack.c.b16 %v897, %v883
        %v1318 = vpack.c.b16 %v898, %v884
        %v1319 = vpack.c.b16 %v899, %v885
        %v1320 = vpack.c.b16 %v900, %v886
        %v1321 = vpack.c.b16 %v901, %v887
        %v1322 = vpack.c.b16 %v902, %v888
        %v1323 = vpack.c.b16 %v917, %v903
        %v1324 = vpack.c.b16 %v918, %v904
        %v1325 = vpack.c.b16 %v919, %v905
        %v1326 = vpack.c.b16 %v920, %v906
        %v1327 = vpack.c.b16 %v921, %v907
        %v1328 = vpack.c.b16 %v922, %v908
        %v1329 = vpack.c.b16 %v923, %v909
        %v1330 = vpack.c.b16 %v924, %v910
        %v1331 = vpack.c.b16 %v925, %v911
        %v1332 = vpack.c.b16 %v926, %v912
        %v1333 = vpack.c.b16 %v927, %v913
        %v1334 = vpack.c.b16 %v928, %v914
        %v1335 = vpack.c.b16 %v929, %v915
        %v1336 = vpack.c.b16 %v930, %v916
        %v1337 = vpack.c.b16 %v945, %v931
        %v1338 = vpack.c.b16 %v946, %v932
        %v1339 = vpack.c.b16 %v947, %v933
        %v1340 = vpack.c.b16 %v948, %v934
        %v1341 = vpack.c.b16 %v949, %v935
        %v1342 = vpack.c.b16 %v950, %v936
        %v1343 = vpack.c.b16 %v951, %v937
        %v1344 = vpack.c.b16 %v952, %v938
        %v1345 = vpack.c.b16 %v953, %v939
        %v1346 = vpack.c.b16 %v954, %v940
        %v1347 = vpack.c.b16 %v955, %v941
        %v1348 = vpack.c.b16 %v956, %v942
        %v1349 = vpack.c.b16 %v957, %v943
        %v1350 = vpack.c.b16 %v958, %v944
        %v1351 = vpack.c.b16 %v973, %v959
        %v1352 = vpack.c.b16 %v974, %v960
        %v1353 = vpack.c.b16 %v975, %v961
        %v1354 = vpack.c.b16 %v976, %v962
        %v1355 = vpack.c.b16 %v977, %v963
        %v1356 = vpack.c.b16 %v978, %v964
        %v1357 = vpack.c.b16 %v979, %v965
        %v1358 = vpack.c.b16 %v980, %v966
        %v1359 = vpack.c.b16 %v981, %v967
        %v1360 = vpack.c.b16 %v982, %v968
        %v1361 = vpack.c.b16 %v983, %v969
        %v1362 = vpack.c.b16 %v984, %v970
        %v1363 = vpack.c.b16 %v985, %v971
        %v1364 = vpack.c.b16 %v986, %v972
        %v1365 = vpack.c.b16 %v1001, %v987
        %v1366 = vpack.c.b16 %v1002, %v988
        %v1367 = vpack.c.b16 %v1003, %v989
        %v1368 = vpack.c.b16 %v1004, %v990
        %v1369 = vpack.c.b16 %v1005, %v991
        %v1370 = vpack.c.b16 %v1006, %v992
        %v1371 = vpack.c.b16 %v1007, %v993
        %v1372 = vpack.c.b16 %v1008, %v994
        %v1373 = vpack.c.b16 %v1009, %v995
        %v1374 = vpack.c.b16 %v1010, %v996
        %v1375 = vpack.c.b16 %v1011, %v997
        %v1376 = vpack.c.b16 %v1012, %v998
        %v1377 = vpack.c.b16 %v1013, %v999
        %v1378 = vpack.c.b16 %v1014, %v1000
        %v1379 = vpack.c.b16 %v1029, %v1015
        %v1380 = vpack.c.b16 %v1030, %v1016
        %v1381 = vpack.c.b16 %v1031, %v1017
        %v1382 = vpack.c.b16 %v1032, %v1018
        %v1383 = vpack.c.b16 %v1033, %v1019
        %v1384 = vpack.c.b16 %v1034, %v1020
        %v1385 = vpack.c.b16 %v1035, %v1021
        %v1386 = vpack.c.b16 %v1036, %v1022
        %v1387 = vpack.c.b16 %v1037, %v1023
        %v1388 = vpack.c.b16 %v1038, %v1024
        %v1389 = vpack.c.b16 %v1039, %v1025
        %v1390 = vpack.c.b16 %v1040, %v1026
        %v1391 = vpack.c.b16 %v1041, %v1027
        %v1392 = vpack.c.b16 %v1042, %v1028
        %v1393 = vpack.c.b16 %v1057, %v1043
        %v1394 = vpack.c.b16 %v1058, %v1044
        %v1395 = vpack.c.b16 %v1059, %v1045
        %v1396 = vpack.c.b16 %v1060, %v1046
        %v1397 = vpack.c.b16 %v1061, %v1047
        %v1398 = vpack.c.b16 %v1062, %v1048
        %v1399 = vpack.c.b16 %v1063, %v1049
        %v1400 = vpack.c.b16 %v1064, %v1050
        %v1401 = vpack.c.b16 %v1065, %v1051
        %v1402 = vpack.c.b16 %v1066, %v1052
        %v1403 = vpack.c.b16 %v1067, %v1053
        %v1404 = vpack.c.b16 %v1068, %v1054
        %v1405 = vpack.c.b16 %v1069, %v1055
        %v1406 = vpack.c.b16 %v1070, %v1056
        %v1407 = vpack.c.b16 %v1085, %v1071
        %v1408 = vpack.c.b16 %v1086, %v1072
        %v1409 = vpack.c.b16 %v1087, %v1073
        %v1410 = vpack.c.b16 %v1088, %v1074
        %v1411 = vpack.c.b16 %v1089, %v1075
        %v1412 = vpack.c.b16 %v1090, %v1076
        %v1413 = vpack.c.b16 %v1091, %v1077
        %v1414 = vpack.c.b16 %v1092, %v1078
        %v1415 = vpack.c.b16 %v1093, %v1079
        %v1416 = vpack.c.b16 %v1094, %v1080
        %v1417 = vpack.c.b16 %v1095, %v1081
        %v1418 = vpack.c.b16 %v1096, %v1082
        %v1419 = vpack.c.b16 %v1097, %v1083
        %v1420 = vpack.c.b16 %v1098, %v1084
        %v1421 = vpack.c.b16 %v1113, %v1099
        %v1422 = vpack.c.b16 %v1114, %v1100
        %v1423 = vpack.c.b16 %v1115, %v1101
        %v1424 = vpack.c.b16 %v1116, %v1102
        %v1425 = vpack.c.b16 %v1117, %v1103
        %v1426 = vpack.c.b16 %v1118, %v1104
        %v1427 = vpack.c.b16 %v1119, %v1105
        %v1428 = vpack.c.b16 %v1120, %v1106
        %v1429 = vpack.c.b16 %v1121, %v1107
        %v1430 = vpack.c.b16 %v1122, %v1108
        %v1431 = vpack.c.b16 %v1123, %v1109
        %v1432 = vpack.c.b16 %v1124, %v1110
        %v1433 = vpack.c.b16 %v1125, %v1111
        %v1434 = vpack.c.b16 %v1126, %v1112
        %v1435 = vpack.c.b16 %v1141, %v1127
        %v1436 = vpack.c.b16 %v1142, %v1128
        %v1437 = vpack.c.b16 %v1143, %v1129
        %v1438 = vpack.c.b16 %v1144, %v1130
        %v1439 = vpack.c.b16 %v1145, %v1131
        %v1440 = vpack.c.b16 %v1146, %v1132
        %v1441 = vpack.c.b16 %v1147, %v1133
        %v1442 = vpack.c.b16 %v1148, %v1134
        %v1443 = vpack.c.b16 %v1149, %v1135
        %v1444 = vpack.c.b16 %v1150, %v1136
        %v1445 = vpack.c.b16 %v1151, %v1137
        %v1446 = vpack.c.b16 %v1152, %v1138
        %v1447 = vpack.c.b16 %v1153, %v1139
        %v1448 = vpack.c.b16 %v1154, %v1140
        %v1449 = vpack.c.b16 %v1169, %v1155
        %v1450 = vpack.c.b16 %v1170, %v1156
        %v1451 = vpack.c.b16 %v1171, %v1157
        %v1452 = vpack.c.b16 %v1172, %v1158
        %v1453 = vpack.c.b16 %v1173, %v1159
        %v1454 = vpack.c.b16 %v1174, %v1160
        %v1455 = vpack.c.b16 %v1175, %v1161
        %v1456 = vpack.c.b16 %v1176, %v1162
        %v1457 = vpack.c.b16 %v1177, %v1163
        %v1458 = vpack.c.b16 %v1178, %v1164
        %v1459 = vpack.c.b16 %v1179, %v1165
        %v1460 = vpack.c.b16 %v1180, %v1166
        %v1461 = vpack.c.b16 %v1181, %v1167
        %v1462 = vpack.c.b16 %v1182, %v1168
        %v1463 = vpack.c.b16 %v1197, %v1183
        %v1464 = vpack.c.b16 %v1198, %v1184
        %v1465 = vpack.c.b16 %v1199, %v1185
        %v1466 = vpack.c.b16 %v1200, %v1186
        %v1467 = vpack.c.b16 %v1201, %v1187
        %v1468 = vpack.c.b16 %v1202, %v1188
        %v1469 = vpack.c.b16 %v1203, %v1189
        %v1470 = vpack.c.b16 %v1204, %v1190
        %v1471 = vpack.c.b16 %v1205, %v1191
        %v1472 = vpack.c.b16 %v1206, %v1192
        %v1473 = vpack.c.b16 %v1207, %v1193
        %v1474 = vpack.c.b16 %v1208, %v1194
        %v1475 = vpack.c.b16 %v1209, %v1195
        %v1476 = vpack.c.b16 %v1210, %v1196
        %v1477 = vpack.c.b16 %v1225, %v1211
        %v1478 = vpack.c.b16 %v1226, %v1212
        %v1479 = vpack.c.b16 %v1227, %v1213
        %v1480 = vpack.c.b16 %v1228, %v1214
        %v1481 = vpack.c.b16 %v1229, %v1215
        %v1482 = vpack.c.b16 %v1230, %v1216
        %v1483 = vpack.c.b16 %v1231, %v1217
        %v1484 = vpack.c.b16 %v1232, %v1218
        %v1485 = vpack.c.b16 %v1233, %v1219
        %v1486 = vpack.c.b16 %v1234, %v1220
        %v1487 = vpack.c.b16 %v1235, %v1221
        %v1488 = vpack.c.b16 %v1236, %v1222
        %v1489 = vpack.c.b16 %v1237, %v1223
        %v1490 = vpack.c.b16 %v1238, %v1224
        %v1491 = vpack.c.b16 %v1253, %v1239
        %v1492 = vpack.c.b16 %v1254, %v1240
        %v1493 = vpack.c.b16 %v1255, %v1241
        %v1494 = vpack.c.b16 %v1256, %v1242
        %v1495 = vpack.c.b16 %v1257, %v1243
        %v1496 = vpack.c.b16 %v1258, %v1244
        %v1497 = vpack.c.b16 %v1259, %v1245
        %v1498 = vpack.c.b16 %v1260, %v1246
        %v1499 = vpack.c.b16 %v1261, %v1247
        %v1500 = vpack.c.b16 %v1262, %v1248
        %v1501 = vpack.c.b16 %v1263, %v1249
        %v1502 = vpack.c.b16 %v1264, %v1250
        %v1503 = vpack.c.b16 %v1265, %v1251
        %v1504 = vpack.c.b16 %v1266, %v1252
        %v1505 = vpack.c.b16 %v1281, %v1267
        %v1506 = vpack.c.b16 %v1282, %v1268
        %v1507 = vpack.c.b16 %v1283, %v1269
        %v1508 = vpack.c.b16 %v1284, %v1270
        %v1509 = vpack.c.b16 %v1285, %v1271
        %v1510 = vpack.c.b16 %v1286, %v1272
        %v1511 = vpack.c.b16 %v1287, %v1273
        %v1512 = vpack.c.b16 %v1288, %v1274
        %v1513 = vpack.c.b16 %v1289, %v1275
        %v1514 = vpack.c.b16 %v1290, %v1276
        %v1515 = vpack.c.b16 %v1291, %v1277
        %v1516 = vpack.c.b16 %v1292, %v1278
        %v1517 = vpack.c.b16 %v1293, %v1279
        %v1518 = vpack.c.b16 %v1294, %v1280
        %v1943 = vunpack.c.l.b16 %v400
        %v1944 = vunpack.c.l.b16 %v401
        %v1945 = vunpack.c.l.b16 %v402
        %v1946 = vunpack.c.l.b16 %v403
        %v1947 = vunpack.c.l.b16 %v404
        %v1948 = vunpack.c.l.b16 %v405
        %v1949 = vunpack.c.l.b16 %v406
        %v1950 = vunpack.c.l.b16 %v407
        %v1951 = vunpack.c.l.b16 %v408
        %v1952 = vunpack.c.l.b16 %v409
        %v1953 = vunpack.c.l.b16 %v410
        %v1954 = vunpack.c.l.b16 %v411
        %v1955 = vunpack.c.l.b16 %v412
        %v1956 = vunpack.c.l.b16 %v413
        %v1957 = vunpack.c.l.b16 %v414
        %v1958 = vunpack.c.l.b16 %v415
        %v1959 = vunpack.c.l.b16 %v416
        %v1960 = vunpack.c.l.b16 %v417
        %v1961 = vunpack.c.l.b16 %v418
        %v1962 = vunpack.c.l.b16 %v419
        %v1963 = vunpack.c.l.b16 %v420
        %v1964 = vunpack.c.l.b16 %v421
        %v1965 = vunpack.c.l.b16 %v422
        %v1966 = vunpack.c.l.b16 %v423
        %v1967 = vunpack.c.l.b16 %v424
        %v1968 = vunpack.c.l.b16 %v425
        %v1969 = vunpack.c.l.b16 %v426
        %v1970 = vunpack.c.l.b16 %v427
        %v1971 = vunpack.c.l.b16 %v428
        %v1972 = vunpack.c.l.b16 %v429
        %v1973 = vunpack.c.l.b16 %v430
        %v1974 = vunpack.c.l.b16 %v431
        %v1975 = vunpack.c.l.b16 %v432
        %v1976 = vunpack.c.l.b16 %v433
        %v1977 = vunpack.c.l.b16 %v434
        %v1978 = vunpack.c.l.b16 %v435
        %v1979 = vunpack.c.l.b16 %v436
        %v1980 = vunpack.c.l.b16 %v437
        %v1981 = vunpack.c.l.b16 %v438
        %v1982 = vunpack.c.l.b16 %v439
        %v1983 = vunpack.c.l.b16 %v440
        %v1984 = vunpack.c.l.b16 %v441
        %v1985 = vunpack.c.l.b16 %v442
        %v1986 = vunpack.c.l.b16 %v443
        %v1987 = vunpack.c.l.b16 %v444
        %v1988 = vunpack.c.l.b16 %v445
        %v1989 = vunpack.c.l.b16 %v446
        %v1990 = vunpack.c.l.b16 %v447
        %v1991 = vunpack.c.l.b16 %v448
        %v1992 = vunpack.c.l.b16 %v449
        %v1993 = vunpack.c.l.b16 %v450
        %v1994 = vunpack.c.l.b16 %v451
        %v1995 = vunpack.c.l.b16 %v452
        %v1996 = vunpack.c.l.b16 %v453
        %v1997 = vunpack.c.l.b16 %v454
        %v1998 = vunpack.c.l.b16 %v455
        %v1999 = vunpack.c.l.b16 %v456
        %v2000 = vunpack.c.l.b16 %v457
        %v2001 = vunpack.c.l.b16 %v458
        %v2002 = vunpack.c.l.b16 %v459
        %v2003 = vunpack.c.l.b16 %v460
        %v2004 = vunpack.c.l.b16 %v461
        %v2005 = vunpack.c.l.b16 %v462
        %v2006 = vunpack.c.l.b16 %v463
        %v2007 = vunpack.c.l.b16 %v464
        %v2008 = vunpack.c.l.b16 %v465
        %v2009 = vunpack.c.l.b16 %v466
        %v2010 = vunpack.c.l.b16 %v467
        %v2011 = vunpack.c.l.b16 %v468
        %v2012 = vunpack.c.l.b16 %v469
        %v2013 = vunpack.c.l.b16 %v470
        %v2014 = vunpack.c.l.b16 %v471
        %v2015 = vunpack.c.l.b16 %v472
        %v2016 = vunpack.c.l.b16 %v473
        %v2017 = vunpack.c.l.b16 %v474
        %v2018 = vunpack.c.l.b16 %v475
        %v2019 = vunpack.c.l.b16 %v476
        %v2020 = vunpack.c.l.b16 %v477
        %v2021 = vunpack.c.l.b16 %v478
        %v2022 = vunpack.c.l.b16 %v479
        %v2023 = vunpack.c.l.b16 %v480
        %v2024 = vunpack.c.l.b16 %v481
        %v2025 = vunpack.c.l.b16 %v482
        %v2026 = vunpack.c.l.b16 %v483
        %v2027 = vunpack.c.l.b16 %v484
        %v2028 = vunpack.c.l.b16 %v485
        %v2029 = vunpack.c.l.b16 %v486
        %v2030 = vunpack.c.l.b16 %v487
        %v2031 = vunpack.c.l.b16 %v488
        %v2032 = vunpack.c.l.b16 %v489
        %v2033 = vunpack.c.l.b16 %v490
        %v2034 = vunpack.c.l.b16 %v491
        %v2035 = vunpack.c.l.b16 %v492
        %v2036 = vunpack.c.l.b16 %v493
        %v2037 = vunpack.c.l.b16 %v494
        %v2038 = vunpack.c.l.b16 %v495
        %v2039 = vunpack.c.l.b16 %v496
        %v2040 = vunpack.c.l.b16 %v497
        %v2041 = vunpack.c.l.b16 %v498
        %v2042 = vunpack.c.l.b16 %v499
        %v2043 = vunpack.c.l.b16 %v500
        %v2044 = vunpack.c.l.b16 %v501
        %v2045 = vunpack.c.l.b16 %v502
        %v2046 = vunpack.c.l.b16 %v503
        %v2047 = vunpack.c.l.b16 %v504
        %v2048 = vunpack.c.l.b16 %v505
        %v2049 = vunpack.c.l.b16 %v506
        %v2050 = vunpack.c.l.b16 %v507
        %v2051 = vunpack.c.l.b16 %v508
        %v2052 = vunpack.c.l.b16 %v509
        %v2053 = vunpack.c.l.b16 %v510
        %v2054 = vunpack.c.l.b16 %v511
        %v2055 = vunpack.c.l.b16 %v512
        %v2056 = vunpack.c.l.b16 %v513
        %v2057 = vunpack.c.l.b16 %v514
        %v2058 = vunpack.c.l.b16 %v515
        %v2059 = vunpack.c.l.b16 %v516
        %v2060 = vunpack.c.l.b16 %v517
        %v2061 = vunpack.c.l.b16 %v518
        %v2062 = vunpack.c.l.b16 %v519
        %v2063 = vunpack.c.l.b16 %v520
        %v2064 = vunpack.c.l.b16 %v521
        %v2065 = vunpack.c.l.b16 %v522
        %v2066 = vunpack.c.l.b16 %v523
        %v2067 = vunpack.c.l.b16 %v524
        %v2068 = vunpack.c.l.b16 %v525
        %v2069 = vunpack.c.l.b16 %v526
        %v2070 = vunpack.c.l.b16 %v527
        %v2071 = vunpack.c.l.b16 %v528
        %v2072 = vunpack.c.l.b16 %v529
        %v2073 = vunpack.c.l.b16 %v530
        %v2074 = vunpack.c.l.b16 %v531
        %v2075 = vunpack.c.l.b16 %v532
        %v2076 = vunpack.c.l.b16 %v533
        %v2077 = vunpack.c.l.b16 %v534
        %v2078 = vunpack.c.l.b16 %v535
        %v2079 = vunpack.c.l.b16 %v536
        %v2080 = vunpack.c.l.b16 %v537
        %v2081 = vunpack.c.l.b16 %v538
        %v2082 = vunpack.c.l.b16 %v539
        %v2083 = vunpack.c.l.b16 %v540
        %v2084 = vunpack.c.l.b16 %v541
        %v2085 = vunpack.c.l.b16 %v542
        %v2086 = vunpack.c.l.b16 %v543
        %v2087 = vunpack.c.l.b16 %v544
        %v2088 = vunpack.c.l.b16 %v545
        %v2089 = vunpack.c.l.b16 %v546
        %v2090 = vunpack.c.l.b16 %v547
        %v2091 = vunpack.c.l.b16 %v548
        %v2092 = vunpack.c.l.b16 %v549
        %v2093 = vunpack.c.l.b16 %v550
        %v2094 = vunpack.c.l.b16 %v551
        %v2095 = vunpack.c.l.b16 %v552
        %v2096 = vunpack.c.l.b16 %v553
        %v2097 = vunpack.c.l.b16 %v554
        %v2098 = vunpack.c.l.b16 %v555
        %v2099 = vunpack.c.l.b16 %v556
        %v2100 = vunpack.c.l.b16 %v557
        %v2101 = vunpack.c.l.b16 %v558
        %v2102 = vunpack.c.l.b16 %v559
        %v2103 = vunpack.c.l.b16 %v560
        %v2104 = vunpack.c.l.b16 %v561
        %v2105 = vunpack.c.l.b16 %v562
        %v2106 = vunpack.c.l.b16 %v563
        %v2107 = vunpack.c.l.b16 %v564
        %v2108 = vunpack.c.l.b16 %v565
        %v2109 = vunpack.c.l.b16 %v566
        %v2110 = vunpack.c.l.b16 %v567
        %v2111 = vunpack.c.l.b16 %v568
        %v2112 = vunpack.c.l.b16 %v569
        %v2113 = vunpack.c.l.b16 %v570
        %v2114 = vunpack.c.l.b16 %v571
        %v2115 = vunpack.c.l.b16 %v572
        %v2116 = vunpack.c.l.b16 %v573
        %v2117 = vunpack.c.l.b16 %v574
        %v2118 = vunpack.c.l.b16 %v575
        %v2119 = vunpack.c.l.b16 %v576
        %v2120 = vunpack.c.l.b16 %v577
        %v2121 = vunpack.c.l.b16 %v578
        %v2122 = vunpack.c.l.b16 %v579
        %v2123 = vunpack.c.l.b16 %v580
        %v2124 = vunpack.c.l.b16 %v581
        %v2125 = vunpack.c.l.b16 %v582
        %v2126 = vunpack.c.l.b16 %v583
        %v2127 = vunpack.c.l.b16 %v584
        %v2128 = vunpack.c.l.b16 %v585
        %v2129 = vunpack.c.l.b16 %v586
        %v2130 = vunpack.c.l.b16 %v587
        %v2131 = vunpack.c.l.b16 %v588
        %v2132 = vunpack.c.l.b16 %v589
        %v2133 = vunpack.c.l.b16 %v590
        %v2134 = vunpack.c.l.b16 %v591
        %v2135 = vunpack.c.l.b16 %v592
        %v2136 = vunpack.c.l.b16 %v593
        %v2137 = vunpack.c.l.b16 %v594
        %v2138 = vunpack.c.l.b16 %v595
        %v2139 = vunpack.c.l.b16 %v596
        %v2140 = vunpack.c.l.b16 %v597
        %v2141 = vunpack.c.l.b16 %v598
        %v2142 = vunpack.c.l.b16 %v599
        %v2143 = vunpack.c.l.b16 %v600
        %v2144 = vunpack.c.l.b16 %v601
        %v2145 = vunpack.c.l.b16 %v602
        %v2146 = vunpack.c.l.b16 %v603
        %v2147 = vunpack.c.l.b16 %v604
        %v2148 = vunpack.c.l.b16 %v605
        %v2149 = vunpack.c.l.b16 %v606
        %v2150 = vunpack.c.l.b16 %v607
        %v2151 = vunpack.c.l.b16 %v608
        %v2152 = vunpack.c.l.b16 %v609
        %v2153 = vunpack.c.l.b16 %v610
        %v2154 = vunpack.c.l.b16 %v611
        %v2155 = vunpack.c.l.b16 %v612
        %v2156 = vunpack.c.l.b16 %v613
        %v2157 = vunpack.c.l.b16 %v614
        %v2158 = vunpack.c.l.b16 %v615
        %v2159 = vpack.c.b16 %v1944, %v1943
        %v2160 = vpack.c.b16 %v1946, %v1945
        %v2161 = vpack.c.b16 %v1948, %v1947
        %v2162 = vpack.c.b16 %v1950, %v1949
        %v2163 = vpack.c.b16 %v1952, %v1951
        %v2164 = vpack.c.b16 %v1954, %v1953
        %v2165 = vpack.c.b16 %v1956, %v1955
        %v2166 = vpack.c.b16 %v1958, %v1957
        %v2167 = vpack.c.b16 %v1960, %v1959
        %v2168 = vpack.c.b16 %v1962, %v1961
        %v2169 = vpack.c.b16 %v1964, %v1963
        %v2170 = vpack.c.b16 %v1966, %v1965
        %v2171 = vpack.c.b16 %v1968, %v1967
        %v2172 = vpack.c.b16 %v1970, %v1969
        %v2173 = vpack.c.b16 %v1972, %v1971
        %v2174 = vpack.c.b16 %v1974, %v1973
        %v2175 = vpack.c.b16 %v1976, %v1975
        %v2176 = vpack.c.b16 %v1978, %v1977
        %v2177 = vpack.c.b16 %v1980, %v1979
        %v2178 = vpack.c.b16 %v1982, %v1981
        %v2179 = vpack.c.b16 %v1984, %v1983
        %v2180 = vpack.c.b16 %v1986, %v1985
        %v2181 = vpack.c.b16 %v1988, %v1987
        %v2182 = vpack.c.b16 %v1990, %v1989
        %v2183 = vpack.c.b16 %v1992, %v1991
        %v2184 = vpack.c.b16 %v1994, %v1993
        %v2185 = vpack.c.b16 %v1996, %v1995
        %v2186 = vpack.c.b16 %v1998, %v1997
        %v2187 = vpack.c.b16 %v2000, %v1999
        %v2188 = vpack.c.b16 %v2002, %v2001
        %v2189 = vpack.c.b16 %v2004, %v2003
        %v2190 = vpack.c.b16 %v2006, %v2005
        %v2191 = vpack.c.b16 %v2008, %v2007
        %v2192 = vpack.c.b16 %v2010, %v2009
        %v2193 = vpack.c.b16 %v2012, %v2011
        %v2194 = vpack.c.b16 %v2014, %v2013
        %v2195 = vpack.c.b16 %v2016, %v2015
        %v2196 = vpack.c.b16 %v2018, %v2017
        %v2197 = vpack.c.b16 %v2020, %v2019
        %v2198 = vpack.c.b16 %v2022, %v2021
        %v2199 = vpack.c.b16 %v2024, %v2023
        %v2200 = vpack.c.b16 %v2026, %v2025
        %v2201 = vpack.c.b16 %v2028, %v2027
        %v2202 = vpack.c.b16 %v2030, %v2029
        %v2203 = vpack.c.b16 %v2032, %v2031
        %v2204 = vpack.c.b16 %v2034, %v2033
        %v2205 = vpack.c.b16 %v2036, %v2035
        %v2206 = vpack.c.b16 %v2038, %v2037
        %v2207 = vpack.c.b16 %v2040, %v2039
        %v2208 = vpack.c.b16 %v2042, %v2041
        %v2209 = vpack.c.b16 %v2044, %v2043
        %v2210 = vpack.c.b16 %v2046, %v2045
        %v2211 = vpack.c.b16 %v2048, %v2047
        %v2212 = vpack.c.b16 %v2050, %v2049
        %v2213 = vpack.c.b16 %v2052, %v2051
        %v2214 = vpack.c.b16 %v2054, %v2053
        %v2215 = vpack.c.b16 %v2056, %v2055
        %v2216 = vpack.c.b16 %v2058, %v2057
        %v2217 = vpack.c.b16 %v2060, %v2059
        %v2218 = vpack.c.b16 %v2062, %v2061
        %v2219 = vpack.c.b16 %v2064, %v2063
        %v2220 = vpack.c.b16 %v2066, %v2065
        %v2221 = vpack.c.b16 %v2068, %v2067
        %v2222 = vpack.c.b16 %v2070, %v2069
        %v2223 = vpack.c.b16 %v2072, %v2071
        %v2224 = vpack.c.b16 %v2074, %v2073
        %v2225 = vpack.c.b16 %v2076, %v2075
        %v2226 = vpack.c.b16 %v2078, %v2077
        %v2227 = vpack.c.b16 %v2080, %v2079
        %v2228 = vpack.c.b16 %v2082, %v2081
        %v2229 = vpack.c.b16 %v2084, %v2083
        %v2230 = vpack.c.b16 %v2086, %v2085
        %v2231 = vpack.c.b16 %v2088, %v2087
        %v2232 = vpack.c.b16 %v2090, %v2089
        %v2233 = vpack.c.b16 %v2092, %v2091
        %v2234 = vpack.c.b16 %v2094, %v2093
        %v2235 = vpack.c.b16 %v2096, %v2095
        %v2236 = vpack.c.b16 %v2098, %v2097
        %v2237 = vpack.c.b16 %v2100, %v2099
        %v2238 = vpack.c.b16 %v2102, %v2101
        %v2239 = vpack.c.b16 %v2104, %v2103
        %v2240 = vpack.c.b16 %v2106, %v2105
        %v2241 = vpack.c.b16 %v2108, %v2107
        %v2242 = vpack.c.b16 %v2110, %v2109
        %v2243 = vpack.c.b16 %v2112, %v2111
        %v2244 = vpack.c.b16 %v2114, %v2113
        %v2245 = vpack.c.b16 %v2116, %v2115
        %v2246 = vpack.c.b16 %v2118, %v2117
        %v2247 = vpack.c.b16 %v2120, %v2119
        %v2248 = vpack.c.b16 %v2122, %v2121
        %v2249 = vpack.c.b16 %v2124, %v2123
        %v2250 = vpack.c.b16 %v2126, %v2125
        %v2251 = vpack.c.b16 %v2128, %v2127
        %v2252 = vpack.c.b16 %v2130, %v2129
        %v2253 = vpack.c.b16 %v2132, %v2131
        %v2254 = vpack.c.b16 %v2134, %v2133
        %v2255 = vpack.c.b16 %v2136, %v2135
        %v2256 = vpack.c.b16 %v2138, %v2137
        %v2257 = vpack.c.b16 %v2140, %v2139
        %v2258 = vpack.c.b16 %v2142, %v2141
        %v2259 = vpack.c.b16 %v2144, %v2143
        %v2260 = vpack.c.b16 %v2146, %v2145
        %v2261 = vpack.c.b16 %v2148, %v2147
        %v2262 = vpack.c.b16 %v2150, %v2149
        %v2263 = vpack.c.b16 %v2152, %v2151
        %v2264 = vpack.c.b16 %v2154, %v2153
        %v2265 = vpack.c.b16 %v2156, %v2155
        %v2266 = vpack.c.b16 %v2158, %v2157
        %vm2375 = vcmask 523264
        %v2377 = vsel %vm2375, %v1308, 0
        %v2380 = vsel %vm2375, %v1322, 0
        %v2383 = vsel %vm2375, %v1336, 0
        %v2386 = vsel %vm2375, %v1350, 0
        %v2389 = vsel %vm2375, %v1364, 0
        %v2392 = vsel %vm2375, %v1378, 0
        %v2395 = vsel %vm2375, %v1392, 0
        %v2398 = vsel %vm2375, %v1406, 0
        %v2401 = vsel %vm2375, %v1420, 0
        %v2404 = vsel %vm2375, %v1434, 0
        %v2407 = vsel %vm2375, %v1448, 0
        %v2410 = vsel %vm2375, %v1462, 0
        %v2413 = vsel %vm2375, %v1476, 0
        %v2416 = vsel %vm2375, %v1490, 0
        %v2419 = vsel %vm2375, %v1504, 0
        %v2422 = vsel %vm2375, %v1518, 0
        %2424 = vmatprep.subr.bf16.mxu0 0
        %2425 = vmatpush1.bf16.msra.mxu0 %v2159
        %2426 = vmatprep.subr.bf16.mxu0 0
        %2427 = vmatpush1.bf16.msra.mxu0 %v2160
        %2428 = vmatprep.subr.bf16.mxu0 0
        %2429 = vmatpush1.bf16.msra.mxu0 %v2161
        %2430 = vmatprep.subr.bf16.mxu0 0
        %2431 = vmatpush1.bf16.msra.mxu0 %v2162
        %2432 = vmatprep.subr.bf16.mxu0 0
        %2433 = vmatpush1.bf16.msra.mxu0 %v2163
        %2434 = vmatprep.subr.bf16.mxu0 0
        %2435 = vmatpush1.bf16.msra.mxu0 %v2164
        %2436 = vmatprep.subr.bf16.mxu0 0
        %2437 = vmatpush1.bf16.msra.mxu0 %v2165
        %2438 = vmatprep.subr.bf16.mxu0 0
        %2439 = vmatpush1.bf16.msra.mxu0 %v2166
        %2440 = vmatprep.subr.bf16.mxu0 0
        %2441 = vmatpush1.bf16.msra.mxu0 %v2167
        %2442 = vmatprep.subr.bf16.mxu0 0
        %2443 = vmatpush1.bf16.msra.mxu0 %v2168
        %2444 = vmatprep.subr.bf16.mxu0 0
        %2445 = vmatpush1.bf16.msra.mxu0 %v2169
        %2446 = vmatprep.subr.bf16.mxu0 0
        %2447 = vmatpush1.bf16.msra.mxu0 %v2170
        %2448 = vmatprep.subr.bf16.mxu0 0
        %2449 = vmatpush1.bf16.msra.mxu0 %v2171
        %2450 = vmatprep.subr.bf16.mxu0 0
        %2451 = vmatpush1.bf16.msra.mxu0 %v2172
        %2452 = vmatprep.subr.bf16.mxu0 0
        %2453 = vmatpush1.bf16.msra.mxu0 %v2173
        %2454 = vmatprep.subr.bf16.mxu0 0
        %2455 = vmatpush1.bf16.msra.mxu0 %v2174
        %2456 = vmatprep.mubr.bf16.mxu0 %v1296
        %2457 = vmatmul.mubr.bf16.gmra.mrb[0].mxu0 %v1295
        %v2458 = vpop.f32.mrb[0].mxu0
        %v2459 = vadd.f32 %v621, %v2458
        %v2460 = vpop.f32.mrb[0].mxu0
        %v2461 = vpop.f32.mrb[0].mxu0
        %v2462 = vadd.f32 %v621, %v2461
        %v2463 = vpop.f32.mrb[0].mxu0
        %2464 = vmatprep.mubr.bf16.mxu0 %v1310
        %2465 = vmatmul.mubr.bf16.gmra.mrb[0].mxu0 %v1309
        %v2466 = vpop.f32.mrb[0].mxu0
        %v2467 = vadd.f32 %v621, %v2466
        %v2468 = vpop.f32.mrb[0].mxu0
        %v2469 = vpop.f32.mrb[0].mxu0
        %v2470 = vadd.f32 %v621, %v2469
        %v2471 = vpop.f32.mrb[0].mxu0
        %2472 = vmatprep.mubr.bf16.mxu0 %v1324
        %2473 = vmatmul.mubr.bf16.gmra.mrb[0].mxu0 %v1323
        %v2474 = vpop.f32.mrb[0].mxu0
        %v2475 = vadd.f32 %v621, %v2474
        %v2476 = vpop.f32.mrb[0].mxu0
        %v2477 = vpop.f32.mrb[0].mxu0
        %v2478 = vadd.f32 %v621, %v2477
        %v2479 = vpop.f32.mrb[0].mxu0
        %2480 = vmatprep.mubr.bf16.mxu0 %v1338
        %2481 = vmatmul.mubr.bf16.gmra.mrb[0].mxu0 %v1337
        %v2482 = vpop.f32.mrb[0].mxu0
        %v2483 = vadd.f32 %v621, %v2482
        %v2484 = vpop.f32.mrb[0].mxu0
        %v2485 = vpop.f32.mrb[0].mxu0
        %v2486 = vadd.f32 %v621, %v2485
        %v2487 = vpop.f32.mrb[0].mxu0
        %2488 = vmatprep.mubr.bf16.mxu0 %v1352
        %2489 = vmatmul.mubr.bf16.gmra.mrb[0].mxu0 %v1351
        %v2490 = vpop.f32.mrb[0].mxu0
        %v2491 = vadd.f32 %v621, %v2490
        %v2492 = vpop.f32.mrb[0].mxu0
        %v2493 = vpop.f32.mrb[0].mxu0
        %v2494 = vadd.f32 %v621, %v2493
        %v2495 = vpop.f32.mrb[0].mxu0
        %2496 = vmatprep.mubr.bf16.mxu0 %v1366
        %2497 = vmatmul.mubr.bf16.gmra.mrb[0].mxu0 %v1365
        %v2498 = vpop.f32.mrb[0].mxu0
        %v2499 = vadd.f32 %v621, %v2498
        %v2500 = vpop.f32.mrb[0].mxu0
        %v2501 = vpop.f32.mrb[0].mxu0
        %v2502 = vadd.f32 %v621, %v2501
        %v2503 = vpop.f32.mrb[0].mxu0
        %2504 = vmatprep.mubr.bf16.mxu0 %v1380
        %2505 = vmatmul.mubr.bf16.gmra.mrb[0].mxu0 %v1379
        %v2506 = vpop.f32.mrb[0].mxu0
        %v2507 = vadd.f32 %v621, %v2506
        %v2508 = vpop.f32.mrb[0].mxu0
        %v2509 = vpop.f32.mrb[0].mxu0
        %v2510 = vadd.f32 %v621, %v2509
        %v2511 = vpop.f32.mrb[0].mxu0
        %2512 = vmatprep.mubr.bf16.mxu0 %v1394
        %2513 = vmatmul.mubr.bf16.gmra.mrb[0].mxu0 %v1393
        %v2514 = vpop.f32.mrb[0].mxu0
        %v2515 = vadd.f32 %v621, %v2514
        %v2516 = vpop.f32.mrb[0].mxu0
        %v2517 = vpop.f32.mrb[0].mxu0
        %v2518 = vadd.f32 %v621, %v2517
        %v2519 = vpop.f32.mrb[0].mxu0
        %2520 = vmatprep.mubr.bf16.mxu0 %v1408
        %2521 = vmatmul.mubr.bf16.gmra.mrb[0].mxu0 %v1407
        %v2522 = vpop.f32.mrb[0].mxu0
        %v2523 = vadd.f32 %v621, %v2522
        %v2524 = vpop.f32.mrb[0].mxu0
        %v2525 = vpop.f32.mrb[0].mxu0
        %v2526 = vadd.f32 %v621, %v2525
        %v2527 = vpop.f32.mrb[0].mxu0
        %2528 = vmatprep.mubr.bf16.mxu0 %v1422
        %2529 = vmatmul.mubr.bf16.gmra.mrb[0].mxu0 %v1421
        %v2530 = vpop.f32.mrb[0].mxu0
        %v2531 = vadd.f32 %v621, %v2530
        %v2532 = vpop.f32.mrb[0].mxu0
        %v2533 = vpop.f32.mrb[0].mxu0
        %v2534 = vadd.f32 %v621, %v2533
        %v2535 = vpop.f32.mrb[0].mxu0
        %2536 = vmatprep.mubr.bf16.mxu0 %v1436
        %2537 = vmatmul.mubr.bf16.gmra.mrb[0].mxu0 %v1435
        %v2538 = vpop.f32.mrb[0].mxu0
        %v2539 = vadd.f32 %v621, %v2538
        %v2540 = vpop.f32.mrb[0].mxu0
        %v2541 = vpop.f32.mrb[0].mxu0
        %v2542 = vadd.f32 %v621, %v2541
        %v2543 = vpop.f32.mrb[0].mxu0
        %2544 = vmatprep.mubr.bf16.mxu0 %v1450
        %2545 = vmatmul.mubr.bf16.gmra.mrb[0].mxu0 %v1449
        %v2546 = vpop.f32.mrb[0].mxu0
        %v2547 = vadd.f32 %v621, %v2546
        %v2548 = vpop.f32.mrb[0].mxu0
        %v2549 = vpop.f32.mrb[0].mxu0
        %v2550 = vadd.f32 %v621, %v2549
        %v2551 = vpop.f32.mrb[0].mxu0
        %2552 = vmatprep.mubr.bf16.mxu0 %v1464
        %2553 = vmatmul.mubr.bf16.gmra.mrb[0].mxu0 %v1463
        %v2554 = vpop.f32.mrb[0].mxu0
        %v2555 = vadd.f32 %v621, %v2554
        %v2556 = vpop.f32.mrb[0].mxu0
        %v2557 = vpop.f32.mrb[0].mxu0
        %v2558 = vadd.f32 %v621, %v2557
        %v2559 = vpop.f32.mrb[0].mxu0
        %2560 = vmatprep.mubr.bf16.mxu0 %v1478
        %2561 = vmatmul.mubr.bf16.gmra.mrb[0].mxu0 %v1477
        %v2562 = vpop.f32.mrb[0].mxu0
        %v2563 = vadd.f32 %v621, %v2562
        %v2564 = vpop.f32.mrb[0].mxu0
        %v2565 = vpop.f32.mrb[0].mxu0
        %v2566 = vadd.f32 %v621, %v2565
        %v2567 = vpop.f32.mrb[0].mxu0
        %2568 = vmatprep.mubr.bf16.mxu0 %v1492
        %2569 = vmatmul.mubr.bf16.gmra.mrb[0].mxu0 %v1491
        %v2570 = vpop.f32.mrb[0].mxu0
        %v2571 = vadd.f32 %v621, %v2570
        %v2572 = vpop.f32.mrb[0].mxu0
        %v2573 = vpop.f32.mrb[0].mxu0
        %v2574 = vadd.f32 %v621, %v2573
        %v2575 = vpop.f32.mrb[0].mxu0
        %2576 = vmatprep.mubr.bf16.mxu0 %v1506
        %2577 = vmatmul.mubr.bf16.gmra.mrb[0].mxu0 %v1505
        %v2578 = vpop.f32.mrb[0].mxu0
        %v2579 = vadd.f32 %v621, %v2578
        %v2580 = vpop.f32.mrb[0].mxu0
        %v2581 = vpop.f32.mrb[0].mxu0
        %v2582 = vadd.f32 %v621, %v2581
        %v2583 = vpop.f32.mrb[0].mxu0
        %2584 = vdwg.mxu0
        %2585 = vmatprep.subr.bf16.mxu0 0
        %2586 = vmatpush1.bf16.msra.mxu0 %v2175
        %2587 = vmatprep.subr.bf16.mxu0 0
        %2588 = vmatpush1.bf16.msra.mxu0 %v2176
        %2589 = vmatprep.subr.bf16.mxu0 0
        %2590 = vmatpush1.bf16.msra.mxu0 %v2177
        %2591 = vmatprep.subr.bf16.mxu0 0
        %2592 = vmatpush1.bf16.msra.mxu0 %v2178
        %2593 = vmatprep.subr.bf16.mxu0 0
        %2594 = vmatpush1.bf16.msra.mxu0 %v2179
        %2595 = vmatprep.subr.bf16.mxu0 0
        %2596 = vmatpush1.bf16.msra.mxu0 %v2180
        %2597 = vmatprep.subr.bf16.mxu0 0
        %2598 = vmatpush1.bf16.msra.mxu0 %v2181
        %2599 = vmatprep.subr.bf16.mxu0 0
        %2600 = vmatpush1.bf16.msra.mxu0 %v2182
        %2601 = vmatprep.subr.bf16.mxu0 0
        %2602 = vmatpush1.bf16.msra.mxu0 %v2183
        %2603 = vmatprep.subr.bf16.mxu0 0
        %2604 = vmatpush1.bf16.msra.mxu0 %v2184
        %2605 = vmatprep.subr.bf16.mxu0 0
        %2606 = vmatpush1.bf16.msra.mxu0 %v2185
        %2607 = vmatprep.subr.bf16.mxu0 0
        %2608 = vmatpush1.bf16.msra.mxu0 %v2186
        %2609 = vmatprep.subr.bf16.mxu0 0
        %2610 = vmatpush1.bf16.msra.mxu0 %v2187
        %2611 = vmatprep.subr.bf16.mxu0 0
        %2612 = vmatpush1.bf16.msra.mxu0 %v2188
        %2613 = vmatprep.subr.bf16.mxu0 0
        %2614 = vmatpush1.bf16.msra.mxu0 %v2189
        %2615 = vmatprep.subr.bf16.mxu0 0
        %2616 = vmatpush1.bf16.msra.mxu0 %v2190
        %2617 = vmatprep.mubr.bf16.mxu0 %v1298
        %2618 = vmatmul.mubr.bf16.gmra.mrb[0].mxu0 %v1297
        %v2619 = vpop.f32.mrb[0].mxu0
        %v2620 = vadd.f32 %v2459, %v2619
        %v2621 = vpop.f32.mrb[0].mxu0
        %v2622 = vpop.f32.mrb[0].mxu0
        %v2623 = vadd.f32 %v2462, %v2622
        %v2624 = vpop.f32.mrb[0].mxu0
        %2625 = vmatprep.mubr.bf16.mxu0 %v1312
        %2626 = vmatmul.mubr.bf16.gmra.mrb[0].mxu0 %v1311
        %v2627 = vpop.f32.mrb[0].mxu0
        %v2628 = vadd.f32 %v2467, %v2627
        %v2629 = vpop.f32.mrb[0].mxu0
        %v2630 = vpop.f32.mrb[0].mxu0
        %v2631 = vadd.f32 %v2470, %v2630
        %v2632 = vpop.f32.mrb[0].mxu0
        %2633 = vmatprep.mubr.bf16.mxu0 %v1326
        %2634 = vmatmul.mubr.bf16.gmra.mrb[0].mxu0 %v1325
        %v2635 = vpop.f32.mrb[0].mxu0
        %v2636 = vadd.f32 %v2475, %v2635
        %v2637 = vpop.f32.mrb[0].mxu0
        %v2638 = vpop.f32.mrb[0].mxu0
        %v2639 = vadd.f32 %v2478, %v2638
        %v2640 = vpop.f32.mrb[0].mxu0
        %2641 = vmatprep.mubr.bf16.mxu0 %v1340
        %2642 = vmatmul.mubr.bf16.gmra.mrb[0].mxu0 %v1339
        %v2643 = vpop.f32.mrb[0].mxu0
        %v2644 = vadd.f32 %v2483, %v2643
        %v2645 = vpop.f32.mrb[0].mxu0
        %v2646 = vpop.f32.mrb[0].mxu0
        %v2647 = vadd.f32 %v2486, %v2646
        %v2648 = vpop.f32.mrb[0].mxu0
        %2649 = vmatprep.mubr.bf16.mxu0 %v1354
        %2650 = vmatmul.mubr.bf16.gmra.mrb[0].mxu0 %v1353
        %v2651 = vpop.f32.mrb[0].mxu0
        %v2652 = vadd.f32 %v2491, %v2651
        %v2653 = vpop.f32.mrb[0].mxu0
        %v2654 = vpop.f32.mrb[0].mxu0
        %v2655 = vadd.f32 %v2494, %v2654
        %v2656 = vpop.f32.mrb[0].mxu0
        %2657 = vmatprep.mubr.bf16.mxu0 %v1368
        %2658 = vmatmul.mubr.bf16.gmra.mrb[0].mxu0 %v1367
        %v2659 = vpop.f32.mrb[0].mxu0
        %v2660 = vadd.f32 %v2499, %v2659
        %v2661 = vpop.f32.mrb[0].mxu0
        %v2662 = vpop.f32.mrb[0].mxu0
        %v2663 = vadd.f32 %v2502, %v2662
        %v2664 = vpop.f32.mrb[0].mxu0
        %2665 = vmatprep.mubr.bf16.mxu0 %v1382
        %2666 = vmatmul.mubr.bf16.gmra.mrb[0].mxu0 %v1381
        %v2667 = vpop.f32.mrb[0].mxu0
        %v2668 = vadd.f32 %v2507, %v2667
        %v2669 = vpop.f32.mrb[0].mxu0
        %v2670 = vpop.f32.mrb[0].mxu0
        %v2671 = vadd.f32 %v2510, %v2670
        %v2672 = vpop.f32.mrb[0].mxu0
        %2673 = vmatprep.mubr.bf16.mxu0 %v1396
        %2674 = vmatmul.mubr.bf16.gmra.mrb[0].mxu0 %v1395
        %v2675 = vpop.f32.mrb[0].mxu0
        %v2676 = vadd.f32 %v2515, %v2675
        %v2677 = vpop.f32.mrb[0].mxu0
        %v2678 = vpop.f32.mrb[0].mxu0
        %v2679 = vadd.f32 %v2518, %v2678
        %v2680 = vpop.f32.mrb[0].mxu0
        %2681 = vmatprep.mubr.bf16.mxu0 %v1410
        %2682 = vmatmul.mubr.bf16.gmra.mrb[0].mxu0 %v1409
        %v2683 = vpop.f32.mrb[0].mxu0
        %v2684 = vadd.f32 %v2523, %v2683
        %v2685 = vpop.f32.mrb[0].mxu0
        %v2686 = vpop.f32.mrb[0].mxu0
        %v2687 = vadd.f32 %v2526, %v2686
        %v2688 = vpop.f32.mrb[0].mxu0
        %2689 = vmatprep.mubr.bf16.mxu0 %v1424
        %2690 = vmatmul.mubr.bf16.gmra.mrb[0].mxu0 %v1423
        %v2691 = vpop.f32.mrb[0].mxu0
        %v2692 = vadd.f32 %v2531, %v2691
        %v2693 = vpop.f32.mrb[0].mxu0
        %v2694 = vpop.f32.mrb[0].mxu0
        %v2695 = vadd.f32 %v2534, %v2694
        %v2696 = vpop.f32.mrb[0].mxu0
        %2697 = vmatprep.mubr.bf16.mxu0 %v1438
        %2698 = vmatmul.mubr.bf16.gmra.mrb[0].mxu0 %v1437
        %v2699 = vpop.f32.mrb[0].mxu0
        %v2700 = vadd.f32 %v2539, %v2699
        %v2701 = vpop.f32.mrb[0].mxu0
        %v2702 = vpop.f32.mrb[0].mxu0
        %v2703 = vadd.f32 %v2542, %v2702
        %v2704 = vpop.f32.mrb[0].mxu0
        %2705 = vmatprep.mubr.bf16.mxu0 %v1452
        %2706 = vmatmul.mubr.bf16.gmra.mrb[0].mxu0 %v1451
        %v2707 = vpop.f32.mrb[0].mxu0
        %v2708 = vadd.f32 %v2547, %v2707
        %v2709 = vpop.f32.mrb[0].mxu0
        %v2710 = vpop.f32.mrb[0].mxu0
        %v2711 = vadd.f32 %v2550, %v2710
        %v2712 = vpop.f32.mrb[0].mxu0
        %2713 = vmatprep.mubr.bf16.mxu0 %v1466
        %2714 = vmatmul.mubr.bf16.gmra.mrb[0].mxu0 %v1465
        %v2715 = vpop.f32.mrb[0].mxu0
        %v2716 = vadd.f32 %v2555, %v2715
        %v2717 = vpop.f32.mrb[0].mxu0
        %v2718 = vpop.f32.mrb[0].mxu0
        %v2719 = vadd.f32 %v2558, %v2718
        %v2720 = vpop.f32.mrb[0].mxu0
        %2721 = vmatprep.mubr.bf16.mxu0 %v1480
        %2722 = vmatmul.mubr.bf16.gmra.mrb[0].mxu0 %v1479
        %v2723 = vpop.f32.mrb[0].mxu0
        %v2724 = vadd.f32 %v2563, %v2723
        %v2725 = vpop.f32.mrb[0].mxu0
        %v2726 = vpop.f32.mrb[0].mxu0
        %v2727 = vadd.f32 %v2566, %v2726
        %v2728 = vpop.f32.mrb[0].mxu0
        %2729 = vmatprep.mubr.bf16.mxu0 %v1494
        %2730 = vmatmul.mubr.bf16.gmra.mrb[0].mxu0 %v1493
        %v2731 = vpop.f32.mrb[0].mxu0
        %v2732 = vadd.f32 %v2571, %v2731
        %v2733 = vpop.f32.mrb[0].mxu0
        %v2734 = vpop.f32.mrb[0].mxu0
        %v2735 = vadd.f32 %v2574, %v2734
        %v2736 = vpop.f32.mrb[0].mxu0
        %2737 = vmatprep.mubr.bf16.mxu0 %v1508
        %2738 = vmatmul.mubr.bf16.gmra.mrb[0].mxu0 %v1507
        %v2739 = vpop.f32.mrb[0].mxu0
        %v2740 = vadd.f32 %v2579, %v2739
        %v2741 = vpop.f32.mrb[0].mxu0
        %v2742 = vpop.f32.mrb[0].mxu0
        %v2743 = vadd.f32 %v2582, %v2742
        %v2744 = vpop.f32.mrb[0].mxu0
        %2745 = vdwg.mxu0
        %2746 = vmatprep.subr.bf16.mxu0 0
        %2747 = vmatpush1.bf16.msra.mxu0 %v2191
        %2748 = vmatprep.subr.bf16.mxu0 0
        %2749 = vmatpush1.bf16.msra.mxu0 %v2192
        %2750 = vmatprep.subr.bf16.mxu0 0
        %2751 = vmatpush1.bf16.msra.mxu0 %v2193
        %2752 = vmatprep.subr.bf16.mxu0 0
        %2753 = vmatpush1.bf16.msra.mxu0 %v2194
        %2754 = vmatprep.subr.bf16.mxu0 0
        %2755 = vmatpush1.bf16.msra.mxu0 %v2195
        %2756 = vmatprep.subr.bf16.mxu0 0
        %2757 = vmatpush1.bf16.msra.mxu0 %v2196
        %2758 = vmatprep.subr.bf16.mxu0 0
        %2759 = vmatpush1.bf16.msra.mxu0 %v2197
        %2760 = vmatprep.subr.bf16.mxu0 0
        %2761 = vmatpush1.bf16.msra.mxu0 %v2198
        %2762 = vmatprep.subr.bf16.mxu0 0
        %2763 = vmatpush1.bf16.msra.mxu0 %v2199
        %2764 = vmatprep.subr.bf16.mxu0 0
        %2765 = vmatpush1.bf16.msra.mxu0 %v2200
        %2766 = vmatprep.subr.bf16.mxu0 0
        %2767 = vmatpush1.bf16.msra.mxu0 %v2201
        %2768 = vmatprep.subr.bf16.mxu0 0
        %2769 = vmatpush1.bf16.msra.mxu0 %v2202
        %2770 = vmatprep.subr.bf16.mxu0 0
        %2771 = vmatpush1.bf16.msra.mxu0 %v2203
        %2772 = vmatprep.subr.bf16.mxu0 0
        %2773 = vmatpush1.bf16.msra.mxu0 %v2204
        %2774 = vmatprep.subr.bf16.mxu0 0
        %2775 = vmatpush1.bf16.msra.mxu0 %v2205
        %2776 = vmatprep.subr.bf16.mxu0 0
        %2777 = vmatpush1.bf16.msra.mxu0 %v2206
        %2778 = vmatprep.mubr.bf16.mxu0 %v1300
        %2779 = vmatmul.mubr.bf16.gmra.mrb[0].mxu0 %v1299
        %v2780 = vpop.f32.mrb[0].mxu0
        %v2781 = vadd.f32 %v2620, %v2780
        %v2782 = vpop.f32.mrb[0].mxu0
        %v2783 = vpop.f32.mrb[0].mxu0
        %v2784 = vadd.f32 %v2623, %v2783
        %v2785 = vpop.f32.mrb[0].mxu0
        %2786 = vmatprep.mubr.bf16.mxu0 %v1314
        %2787 = vmatmul.mubr.bf16.gmra.mrb[0].mxu0 %v1313
        %v2788 = vpop.f32.mrb[0].mxu0
        %v2789 = vadd.f32 %v2628, %v2788
        %v2790 = vpop.f32.mrb[0].mxu0
        %v2791 = vpop.f32.mrb[0].mxu0
        %v2792 = vadd.f32 %v2631, %v2791
        %v2793 = vpop.f32.mrb[0].mxu0
        %2794 = vmatprep.mubr.bf16.mxu0 %v1328
        %2795 = vmatmul.mubr.bf16.gmra.mrb[0].mxu0 %v1327
        %v2796 = vpop.f32.mrb[0].mxu0
        %v2797 = vadd.f32 %v2636, %v2796
        %v2798 = vpop.f32.mrb[0].mxu0
        %v2799 = vpop.f32.mrb[0].mxu0
        %v2800 = vadd.f32 %v2639, %v2799
        %v2801 = vpop.f32.mrb[0].mxu0
        %2802 = vmatprep.mubr.bf16.mxu0 %v1342
        %2803 = vmatmul.mubr.bf16.gmra.mrb[0].mxu0 %v1341
        %v2804 = vpop.f32.mrb[0].mxu0
        %v2805 = vadd.f32 %v2644, %v2804
        %v2806 = vpop.f32.mrb[0].mxu0
        %v2807 = vpop.f32.mrb[0].mxu0
        %v2808 = vadd.f32 %v2647, %v2807
        %v2809 = vpop.f32.mrb[0].mxu0
        %2810 = vmatprep.mubr.bf16.mxu0 %v1356
        %2811 = vmatmul.mubr.bf16.gmra.mrb[0].mxu0 %v1355
        %v2812 = vpop.f32.mrb[0].mxu0
        %v2813 = vadd.f32 %v2652, %v2812
        %v2814 = vpop.f32.mrb[0].mxu0
        %v2815 = vpop.f32.mrb[0].mxu0
        %v2816 = vadd.f32 %v2655, %v2815
        %v2817 = vpop.f32.mrb[0].mxu0
        %2818 = vmatprep.mubr.bf16.mxu0 %v1370
        %2819 = vmatmul.mubr.bf16.gmra.mrb[0].mxu0 %v1369
        %v2820 = vpop.f32.mrb[0].mxu0
        %v2821 = vadd.f32 %v2660, %v2820
        %v2822 = vpop.f32.mrb[0].mxu0
        %v2823 = vpop.f32.mrb[0].mxu0
        %v2824 = vadd.f32 %v2663, %v2823
        %v2825 = vpop.f32.mrb[0].mxu0
        %2826 = vmatprep.mubr.bf16.mxu0 %v1384
        %2827 = vmatmul.mubr.bf16.gmra.mrb[0].mxu0 %v1383
        %v2828 = vpop.f32.mrb[0].mxu0
        %v2829 = vadd.f32 %v2668, %v2828
        %v2830 = vpop.f32.mrb[0].mxu0
        %v2831 = vpop.f32.mrb[0].mxu0
        %v2832 = vadd.f32 %v2671, %v2831
        %v2833 = vpop.f32.mrb[0].mxu0
        %2834 = vmatprep.mubr.bf16.mxu0 %v1398
        %2835 = vmatmul.mubr.bf16.gmra.mrb[0].mxu0 %v1397
        %v2836 = vpop.f32.mrb[0].mxu0
        %v2837 = vadd.f32 %v2676, %v2836
        %v2838 = vpop.f32.mrb[0].mxu0
        %v2839 = vpop.f32.mrb[0].mxu0
        %v2840 = vadd.f32 %v2679, %v2839
        %v2841 = vpop.f32.mrb[0].mxu0
        %2842 = vmatprep.mubr.bf16.mxu0 %v1412
        %2843 = vmatmul.mubr.bf16.gmra.mrb[0].mxu0 %v1411
        %v2844 = vpop.f32.mrb[0].mxu0
        %v2845 = vadd.f32 %v2684, %v2844
        %v2846 = vpop.f32.mrb[0].mxu0
        %v2847 = vpop.f32.mrb[0].mxu0
        %v2848 = vadd.f32 %v2687, %v2847
        %v2849 = vpop.f32.mrb[0].mxu0
        %2850 = vmatprep.mubr.bf16.mxu0 %v1426
        %2851 = vmatmul.mubr.bf16.gmra.mrb[0].mxu0 %v1425
        %v2852 = vpop.f32.mrb[0].mxu0
        %v2853 = vadd.f32 %v2692, %v2852
        %v2854 = vpop.f32.mrb[0].mxu0
        %v2855 = vpop.f32.mrb[0].mxu0
        %v2856 = vadd.f32 %v2695, %v2855
        %v2857 = vpop.f32.mrb[0].mxu0
        %2858 = vmatprep.mubr.bf16.mxu0 %v1440
        %2859 = vmatmul.mubr.bf16.gmra.mrb[0].mxu0 %v1439
        %v2860 = vpop.f32.mrb[0].mxu0
        %v2861 = vadd.f32 %v2700, %v2860
        %v2862 = vpop.f32.mrb[0].mxu0
        %v2863 = vpop.f32.mrb[0].mxu0
        %v2864 = vadd.f32 %v2703, %v2863
        %v2865 = vpop.f32.mrb[0].mxu0
        %2866 = vmatprep.mubr.bf16.mxu0 %v1454
        %2867 = vmatmul.mubr.bf16.gmra.mrb[0].mxu0 %v1453
        %v2868 = vpop.f32.mrb[0].mxu0
        %v2869 = vadd.f32 %v2708, %v2868
        %v2870 = vpop.f32.mrb[0].mxu0
        %v2871 = vpop.f32.mrb[0].mxu0
        %v2872 = vadd.f32 %v2711, %v2871
        %v2873 = vpop.f32.mrb[0].mxu0
        %2874 = vmatprep.mubr.bf16.mxu0 %v1468
        %2875 = vmatmul.mubr.bf16.gmra.mrb[0].mxu0 %v1467
        %v2876 = vpop.f32.mrb[0].mxu0
        %v2877 = vadd.f32 %v2716, %v2876
        %v2878 = vpop.f32.mrb[0].mxu0
        %v2879 = vpop.f32.mrb[0].mxu0
        %v2880 = vadd.f32 %v2719, %v2879
        %v2881 = vpop.f32.mrb[0].mxu0
        %2882 = vmatprep.mubr.bf16.mxu0 %v1482
        %2883 = vmatmul.mubr.bf16.gmra.mrb[0].mxu0 %v1481
        %v2884 = vpop.f32.mrb[0].mxu0
        %v2885 = vadd.f32 %v2724, %v2884
        %v2886 = vpop.f32.mrb[0].mxu0
        %v2887 = vpop.f32.mrb[0].mxu0
        %v2888 = vadd.f32 %v2727, %v2887
        %v2889 = vpop.f32.mrb[0].mxu0
        %2890 = vmatprep.mubr.bf16.mxu0 %v1496
        %2891 = vmatmul.mubr.bf16.gmra.mrb[0].mxu0 %v1495
        %v2892 = vpop.f32.mrb[0].mxu0
        %v2893 = vadd.f32 %v2732, %v2892
        %v2894 = vpop.f32.mrb[0].mxu0
        %v2895 = vpop.f32.mrb[0].mxu0
        %v2896 = vadd.f32 %v2735, %v2895
        %v2897 = vpop.f32.mrb[0].mxu0
        %2898 = vmatprep.mubr.bf16.mxu0 %v1510
        %2899 = vmatmul.mubr.bf16.gmra.mrb[0].mxu0 %v1509
        %v2900 = vpop.f32.mrb[0].mxu0
        %v2901 = vadd.f32 %v2740, %v2900
        %v2902 = vpop.f32.mrb[0].mxu0
        %v2903 = vpop.f32.mrb[0].mxu0
        %v2904 = vadd.f32 %v2743, %v2903
        %v2905 = vpop.f32.mrb[0].mxu0
        %2906 = vdwg.mxu0
        %2907 = vmatprep.subr.bf16.mxu0 0
        %2908 = vmatpush1.bf16.msra.mxu0 %v2207
        %2909 = vmatprep.subr.bf16.mxu0 0
        %2910 = vmatpush1.bf16.msra.mxu0 %v2208
        %2911 = vmatprep.subr.bf16.mxu0 0
        %2912 = vmatpush1.bf16.msra.mxu0 %v2209
        %2913 = vmatprep.subr.bf16.mxu0 0
        %2914 = vmatpush1.bf16.msra.mxu0 %v2210
        %2915 = vmatprep.subr.bf16.mxu0 0
        %2916 = vmatpush1.bf16.msra.mxu0 %v2211
        %2917 = vmatprep.subr.bf16.mxu0 0
        %2918 = vmatpush1.bf16.msra.mxu0 %v2212
        %2919 = vmatprep.subr.bf16.mxu0 0
        %2920 = vmatpush1.bf16.msra.mxu0 %v2213
        %2921 = vmatprep.subr.bf16.mxu0 0
        %2922 = vmatpush1.bf16.msra.mxu0 %v2214
        %2923 = vmatprep.subr.bf16.mxu0 0
        %2924 = vmatpush1.bf16.msra.mxu0 %v2215
        %2925 = vmatprep.subr.bf16.mxu0 0
        %2926 = vmatpush1.bf16.msra.mxu0 %v2216
        %2927 = vmatprep.subr.bf16.mxu0 0
        %2928 = vmatpush1.bf16.msra.mxu0 %v2217
        %2929 = vmatprep.subr.bf16.mxu0 0
        %2930 = vmatpush1.bf16.msra.mxu0 %v2218
        %2931 = vmatprep.subr.bf16.mxu0 0
        %2932 = vmatpush1.bf16.msra.mxu0 %v2219
        %2933 = vmatprep.subr.bf16.mxu0 0
        %2934 = vmatpush1.bf16.msra.mxu0 %v2220
        %2935 = vmatprep.subr.bf16.mxu0 0
        %2936 = vmatpush1.bf16.msra.mxu0 %v2221
        %2937 = vmatprep.subr.bf16.mxu0 0
        %2938 = vmatpush1.bf16.msra.mxu0 %v2222
        %2939 = vmatprep.mubr.bf16.mxu0 %v1302
        %2940 = vmatmul.mubr.bf16.gmra.mrb[0].mxu0 %v1301
        %v2941 = vpop.f32.mrb[0].mxu0
        %v2942 = vadd.f32 %v2781, %v2941
        %v2943 = vpop.f32.mrb[0].mxu0
        %v2944 = vpop.f32.mrb[0].mxu0
        %v2945 = vadd.f32 %v2784, %v2944
        %v2946 = vpop.f32.mrb[0].mxu0
        %2947 = vmatprep.mubr.bf16.mxu0 %v1316
        %2948 = vmatmul.mubr.bf16.gmra.mrb[0].mxu0 %v1315
        %v2949 = vpop.f32.mrb[0].mxu0
        %v2950 = vadd.f32 %v2789, %v2949
        %v2951 = vpop.f32.mrb[0].mxu0
        %v2952 = vpop.f32.mrb[0].mxu0
        %v2953 = vadd.f32 %v2792, %v2952
        %v2954 = vpop.f32.mrb[0].mxu0
        %2955 = vmatprep.mubr.bf16.mxu0 %v1330
        %2956 = vmatmul.mubr.bf16.gmra.mrb[0].mxu0 %v1329
        %v2957 = vpop.f32.mrb[0].mxu0
        %v2958 = vadd.f32 %v2797, %v2957
        %v2959 = vpop.f32.mrb[0].mxu0
        %v2960 = vpop.f32.mrb[0].mxu0
        %v2961 = vadd.f32 %v2800, %v2960
        %v2962 = vpop.f32.mrb[0].mxu0
        %2963 = vmatprep.mubr.bf16.mxu0 %v1344
        %2964 = vmatmul.mubr.bf16.gmra.mrb[0].mxu0 %v1343
        %v2965 = vpop.f32.mrb[0].mxu0
        %v2966 = vadd.f32 %v2805, %v2965
        %v2967 = vpop.f32.mrb[0].mxu0
        %v2968 = vpop.f32.mrb[0].mxu0
        %v2969 = vadd.f32 %v2808, %v2968
        %v2970 = vpop.f32.mrb[0].mxu0
        %2971 = vmatprep.mubr.bf16.mxu0 %v1358
        %2972 = vmatmul.mubr.bf16.gmra.mrb[0].mxu0 %v1357
        %v2973 = vpop.f32.mrb[0].mxu0
        %v2974 = vadd.f32 %v2813, %v2973
        %v2975 = vpop.f32.mrb[0].mxu0
        %v2976 = vpop.f32.mrb[0].mxu0
        %v2977 = vadd.f32 %v2816, %v2976
        %v2978 = vpop.f32.mrb[0].mxu0
        %2979 = vmatprep.mubr.bf16.mxu0 %v1372
        %2980 = vmatmul.mubr.bf16.gmra.mrb[0].mxu0 %v1371
        %v2981 = vpop.f32.mrb[0].mxu0
        %v2982 = vadd.f32 %v2821, %v2981
        %v2983 = vpop.f32.mrb[0].mxu0
        %v2984 = vpop.f32.mrb[0].mxu0
        %v2985 = vadd.f32 %v2824, %v2984
        %v2986 = vpop.f32.mrb[0].mxu0
        %2987 = vmatprep.mubr.bf16.mxu0 %v1386
        %2988 = vmatmul.mubr.bf16.gmra.mrb[0].mxu0 %v1385
        %v2989 = vpop.f32.mrb[0].mxu0
        %v2990 = vadd.f32 %v2829, %v2989
        %v2991 = vpop.f32.mrb[0].mxu0
        %v2992 = vpop.f32.mrb[0].mxu0
        %v2993 = vadd.f32 %v2832, %v2992
        %v2994 = vpop.f32.mrb[0].mxu0
        %2995 = vmatprep.mubr.bf16.mxu0 %v1400
        %2996 = vmatmul.mubr.bf16.gmra.mrb[0].mxu0 %v1399
        %v2997 = vpop.f32.mrb[0].mxu0
        %v2998 = vadd.f32 %v2837, %v2997
        %v2999 = vpop.f32.mrb[0].mxu0
        %v3000 = vpop.f32.mrb[0].mxu0
        %v3001 = vadd.f32 %v2840, %v3000
        %v3002 = vpop.f32.mrb[0].mxu0
        %3003 = vmatprep.mubr.bf16.mxu0 %v1414
        %3004 = vmatmul.mubr.bf16.gmra.mrb[0].mxu0 %v1413
        %v3005 = vpop.f32.mrb[0].mxu0
        %v3006 = vadd.f32 %v2845, %v3005
        %v3007 = vpop.f32.mrb[0].mxu0
        %v3008 = vpop.f32.mrb[0].mxu0
        %v3009 = vadd.f32 %v2848, %v3008
        %v3010 = vpop.f32.mrb[0].mxu0
        %3011 = vmatprep.mubr.bf16.mxu0 %v1428
        %3012 = vmatmul.mubr.bf16.gmra.mrb[0].mxu0 %v1427
        %v3013 = vpop.f32.mrb[0].mxu0
        %v3014 = vadd.f32 %v2853, %v3013
        %v3015 = vpop.f32.mrb[0].mxu0
        %v3016 = vpop.f32.mrb[0].mxu0
        %v3017 = vadd.f32 %v2856, %v3016
        %v3018 = vpop.f32.mrb[0].mxu0
        %3019 = vmatprep.mubr.bf16.mxu0 %v1442
        %3020 = vmatmul.mubr.bf16.gmra.mrb[0].mxu0 %v1441
        %v3021 = vpop.f32.mrb[0].mxu0
        %v3022 = vadd.f32 %v2861, %v3021
        %v3023 = vpop.f32.mrb[0].mxu0
        %v3024 = vpop.f32.mrb[0].mxu0
        %v3025 = vadd.f32 %v2864, %v3024
        %v3026 = vpop.f32.mrb[0].mxu0
        %3027 = vmatprep.mubr.bf16.mxu0 %v1456
        %3028 = vmatmul.mubr.bf16.gmra.mrb[0].mxu0 %v1455
        %v3029 = vpop.f32.mrb[0].mxu0
        %v3030 = vadd.f32 %v2869, %v3029
        %v3031 = vpop.f32.mrb[0].mxu0
        %v3032 = vpop.f32.mrb[0].mxu0
        %v3033 = vadd.f32 %v2872, %v3032
        %v3034 = vpop.f32.mrb[0].mxu0
        %3035 = vmatprep.mubr.bf16.mxu0 %v1470
        %3036 = vmatmul.mubr.bf16.gmra.mrb[0].mxu0 %v1469
        %v3037 = vpop.f32.mrb[0].mxu0
        %v3038 = vadd.f32 %v2877, %v3037
        %v3039 = vpop.f32.mrb[0].mxu0
        %v3040 = vpop.f32.mrb[0].mxu0
        %v3041 = vadd.f32 %v2880, %v3040
        %v3042 = vpop.f32.mrb[0].mxu0
        %3043 = vmatprep.mubr.bf16.mxu0 %v1484
        %3044 = vmatmul.mubr.bf16.gmra.mrb[0].mxu0 %v1483
        %v3045 = vpop.f32.mrb[0].mxu0
        %v3046 = vadd.f32 %v2885, %v3045
        %v3047 = vpop.f32.mrb[0].mxu0
        %v3048 = vpop.f32.mrb[0].mxu0
        %v3049 = vadd.f32 %v2888, %v3048
        %v3050 = vpop.f32.mrb[0].mxu0
        %3051 = vmatprep.mubr.bf16.mxu0 %v1498
        %3052 = vmatmul.mubr.bf16.gmra.mrb[0].mxu0 %v1497
        %v3053 = vpop.f32.mrb[0].mxu0
        %v3054 = vadd.f32 %v2893, %v3053
        %v3055 = vpop.f32.mrb[0].mxu0
        %v3056 = vpop.f32.mrb[0].mxu0
        %v3057 = vadd.f32 %v2896, %v3056
        %v3058 = vpop.f32.mrb[0].mxu0
        %3059 = vmatprep.mubr.bf16.mxu0 %v1512
        %3060 = vmatmul.mubr.bf16.gmra.mrb[0].mxu0 %v1511
        %v3061 = vpop.f32.mrb[0].mxu0
        %v3062 = vadd.f32 %v2901, %v3061
        %v3063 = vpop.f32.mrb[0].mxu0
        %v3064 = vpop.f32.mrb[0].mxu0
        %v3065 = vadd.f32 %v2904, %v3064
        %v3066 = vpop.f32.mrb[0].mxu0
        %3067 = vdwg.mxu0
        %3068 = vmatprep.subr.bf16.mxu0 0
        %3069 = vmatpush1.bf16.msra.mxu0 %v2223
        %3070 = vmatprep.subr.bf16.mxu0 0
        %3071 = vmatpush1.bf16.msra.mxu0 %v2224
        %3072 = vmatprep.subr.bf16.mxu0 0
        %3073 = vmatpush1.bf16.msra.mxu0 %v2225
        %3074 = vmatprep.subr.bf16.mxu0 0
        %3075 = vmatpush1.bf16.msra.mxu0 %v2226
        %3076 = vmatprep.subr.bf16.mxu0 0
        %3077 = vmatpush1.bf16.msra.mxu0 %v2227
        %3078 = vmatprep.subr.bf16.mxu0 0
        %3079 = vmatpush1.bf16.msra.mxu0 %v2228
        %3080 = vmatprep.subr.bf16.mxu0 0
        %3081 = vmatpush1.bf16.msra.mxu0 %v2229
        %3082 = vmatprep.subr.bf16.mxu0 0
        %3083 = vmatpush1.bf16.msra.mxu0 %v2230
        %3084 = vmatprep.subr.bf16.mxu0 0
        %3085 = vmatpush1.bf16.msra.mxu0 %v2231
        %3086 = vmatprep.subr.bf16.mxu0 0
        %3087 = vmatpush1.bf16.msra.mxu0 %v2232
        %3088 = vmatprep.subr.bf16.mxu0 0
        %3089 = vmatpush1.bf16.msra.mxu0 %v2233
        %3090 = vmatprep.subr.bf16.mxu0 0
        %3091 = vmatpush1.bf16.msra.mxu0 %v2234
        %3092 = vmatprep.subr.bf16.mxu0 0
        %3093 = vmatpush1.bf16.msra.mxu0 %v2235
        %3094 = vmatprep.subr.bf16.mxu0 0
        %3095 = vmatpush1.bf16.msra.mxu0 %v2236
        %3096 = vmatprep.subr.bf16.mxu0 0
        %3097 = vmatpush1.bf16.msra.mxu0 %v2237
        %3098 = vmatprep.subr.bf16.mxu0 0
        %3099 = vmatpush1.bf16.msra.mxu0 %v2238
        %3100 = vmatprep.mubr.bf16.mxu0 %v1304
        %3101 = vmatmul.mubr.bf16.gmra.mrb[0].mxu0 %v1303
        %v3102 = vpop.f32.mrb[0].mxu0
        %v3103 = vadd.f32 %v2942, %v3102
        %v3104 = vpop.f32.mrb[0].mxu0
        %v3105 = vpop.f32.mrb[0].mxu0
        %v3106 = vadd.f32 %v2945, %v3105
        %v3107 = vpop.f32.mrb[0].mxu0
        %3108 = vmatprep.mubr.bf16.mxu0 %v1318
        %3109 = vmatmul.mubr.bf16.gmra.mrb[0].mxu0 %v1317
        %v3110 = vpop.f32.mrb[0].mxu0
        %v3111 = vadd.f32 %v2950, %v3110
        %v3112 = vpop.f32.mrb[0].mxu0
        %v3113 = vpop.f32.mrb[0].mxu0
        %v3114 = vadd.f32 %v2953, %v3113
        %v3115 = vpop.f32.mrb[0].mxu0
        %3116 = vmatprep.mubr.bf16.mxu0 %v1332
        %3117 = vmatmul.mubr.bf16.gmra.mrb[0].mxu0 %v1331
        %v3118 = vpop.f32.mrb[0].mxu0
        %v3119 = vadd.f32 %v2958, %v3118
        %v3120 = vpop.f32.mrb[0].mxu0
        %v3121 = vpop.f32.mrb[0].mxu0
        %v3122 = vadd.f32 %v2961, %v3121
        %v3123 = vpop.f32.mrb[0].mxu0
        %3124 = vmatprep.mubr.bf16.mxu0 %v1346
        %3125 = vmatmul.mubr.bf16.gmra.mrb[0].mxu0 %v1345
        %v3126 = vpop.f32.mrb[0].mxu0
        %v3127 = vadd.f32 %v2966, %v3126
        %v3128 = vpop.f32.mrb[0].mxu0
        %v3129 = vpop.f32.mrb[0].mxu0
        %v3130 = vadd.f32 %v2969, %v3129
        %v3131 = vpop.f32.mrb[0].mxu0
        %3132 = vmatprep.mubr.bf16.mxu0 %v1360
        %3133 = vmatmul.mubr.bf16.gmra.mrb[0].mxu0 %v1359
        %v3134 = vpop.f32.mrb[0].mxu0
        %v3135 = vadd.f32 %v2974, %v3134
        %v3136 = vpop.f32.mrb[0].mxu0
        %v3137 = vpop.f32.mrb[0].mxu0
        %v3138 = vadd.f32 %v2977, %v3137
        %v3139 = vpop.f32.mrb[0].mxu0
        %3140 = vmatprep.mubr.bf16.mxu0 %v1374
        %3141 = vmatmul.mubr.bf16.gmra.mrb[0].mxu0 %v1373
        %v3142 = vpop.f32.mrb[0].mxu0
        %v3143 = vadd.f32 %v2982, %v3142
        %v3144 = vpop.f32.mrb[0].mxu0
        %v3145 = vpop.f32.mrb[0].mxu0
        %v3146 = vadd.f32 %v2985, %v3145
        %v3147 = vpop.f32.mrb[0].mxu0
        %3148 = vmatprep.mubr.bf16.mxu0 %v1388
        %3149 = vmatmul.mubr.bf16.gmra.mrb[0].mxu0 %v1387
        %v3150 = vpop.f32.mrb[0].mxu0
        %v3151 = vadd.f32 %v2990, %v3150
        %v3152 = vpop.f32.mrb[0].mxu0
        %v3153 = vpop.f32.mrb[0].mxu0
        %v3154 = vadd.f32 %v2993, %v3153
        %v3155 = vpop.f32.mrb[0].mxu0
        %3156 = vmatprep.mubr.bf16.mxu0 %v1402
        %3157 = vmatmul.mubr.bf16.gmra.mrb[0].mxu0 %v1401
        %v3158 = vpop.f32.mrb[0].mxu0
        %v3159 = vadd.f32 %v2998, %v3158
        %v3160 = vpop.f32.mrb[0].mxu0
        %v3161 = vpop.f32.mrb[0].mxu0
        %v3162 = vadd.f32 %v3001, %v3161
        %v3163 = vpop.f32.mrb[0].mxu0
        %3164 = vmatprep.mubr.bf16.mxu0 %v1416
        %3165 = vmatmul.mubr.bf16.gmra.mrb[0].mxu0 %v1415
        %v3166 = vpop.f32.mrb[0].mxu0
        %v3167 = vadd.f32 %v3006, %v3166
        %v3168 = vpop.f32.mrb[0].mxu0
        %v3169 = vpop.f32.mrb[0].mxu0
        %v3170 = vadd.f32 %v3009, %v3169
        %v3171 = vpop.f32.mrb[0].mxu0
        %3172 = vmatprep.mubr.bf16.mxu0 %v1430
        %3173 = vmatmul.mubr.bf16.gmra.mrb[0].mxu0 %v1429
        %v3174 = vpop.f32.mrb[0].mxu0
        %v3175 = vadd.f32 %v3014, %v3174
        %v3176 = vpop.f32.mrb[0].mxu0
        %v3177 = vpop.f32.mrb[0].mxu0
        %v3178 = vadd.f32 %v3017, %v3177
        %v3179 = vpop.f32.mrb[0].mxu0
        %3180 = vmatprep.mubr.bf16.mxu0 %v1444
        %3181 = vmatmul.mubr.bf16.gmra.mrb[0].mxu0 %v1443
        %v3182 = vpop.f32.mrb[0].mxu0
        %v3183 = vadd.f32 %v3022, %v3182
        %v3184 = vpop.f32.mrb[0].mxu0
        %v3185 = vpop.f32.mrb[0].mxu0
        %v3186 = vadd.f32 %v3025, %v3185
        %v3187 = vpop.f32.mrb[0].mxu0
        %3188 = vmatprep.mubr.bf16.mxu0 %v1458
        %3189 = vmatmul.mubr.bf16.gmra.mrb[0].mxu0 %v1457
        %v3190 = vpop.f32.mrb[0].mxu0
        %v3191 = vadd.f32 %v3030, %v3190
        %v3192 = vpop.f32.mrb[0].mxu0
        %v3193 = vpop.f32.mrb[0].mxu0
        %v3194 = vadd.f32 %v3033, %v3193
        %v3195 = vpop.f32.mrb[0].mxu0
        %3196 = vmatprep.mubr.bf16.mxu0 %v1472
        %3197 = vmatmul.mubr.bf16.gmra.mrb[0].mxu0 %v1471
        %v3198 = vpop.f32.mrb[0].mxu0
        %v3199 = vadd.f32 %v3038, %v3198
        %v3200 = vpop.f32.mrb[0].mxu0
        %v3201 = vpop.f32.mrb[0].mxu0
        %v3202 = vadd.f32 %v3041, %v3201
        %v3203 = vpop.f32.mrb[0].mxu0
        %3204 = vmatprep.mubr.bf16.mxu0 %v1486
        %3205 = vmatmul.mubr.bf16.gmra.mrb[0].mxu0 %v1485
        %v3206 = vpop.f32.mrb[0].mxu0
        %v3207 = vadd.f32 %v3046, %v3206
        %v3208 = vpop.f32.mrb[0].mxu0
        %v3209 = vpop.f32.mrb[0].mxu0
        %v3210 = vadd.f32 %v3049, %v3209
        %v3211 = vpop.f32.mrb[0].mxu0
        %3212 = vmatprep.mubr.bf16.mxu0 %v1500
        %3213 = vmatmul.mubr.bf16.gmra.mrb[0].mxu0 %v1499
        %v3214 = vpop.f32.mrb[0].mxu0
        %v3215 = vadd.f32 %v3054, %v3214
        %v3216 = vpop.f32.mrb[0].mxu0
        %v3217 = vpop.f32.mrb[0].mxu0
        %v3218 = vadd.f32 %v3057, %v3217
        %v3219 = vpop.f32.mrb[0].mxu0
        %3220 = vmatprep.mubr.bf16.mxu0 %v1514
        %3221 = vmatmul.mubr.bf16.gmra.mrb[0].mxu0 %v1513
        %v3222 = vpop.f32.mrb[0].mxu0
        %v3223 = vadd.f32 %v3062, %v3222
        %v3224 = vpop.f32.mrb[0].mxu0
        %v3225 = vpop.f32.mrb[0].mxu0
        %v3226 = vadd.f32 %v3065, %v3225
        %v3227 = vpop.f32.mrb[0].mxu0
        %3228 = vdwg.mxu0
        %3229 = vmatprep.subr.bf16.mxu0 0
        %3230 = vmatpush1.bf16.msra.mxu0 %v2239
        %3231 = vmatprep.subr.bf16.mxu0 0
        %3232 = vmatpush1.bf16.msra.mxu0 %v2240
        %3233 = vmatprep.subr.bf16.mxu0 0
        %3234 = vmatpush1.bf16.msra.mxu0 %v2241
        %3235 = vmatprep.subr.bf16.mxu0 0
        %3236 = vmatpush1.bf16.msra.mxu0 %v2242
        %3237 = vmatprep.subr.bf16.mxu0 0
        %3238 = vmatpush1.bf16.msra.mxu0 %v2243
        %3239 = vmatprep.subr.bf16.mxu0 0
        %3240 = vmatpush1.bf16.msra.mxu0 %v2244
        %3241 = vmatprep.subr.bf16.mxu0 0
        %3242 = vmatpush1.bf16.msra.mxu0 %v2245
        %3243 = vmatprep.subr.bf16.mxu0 0
        %3244 = vmatpush1.bf16.msra.mxu0 %v2246
        %3245 = vmatprep.subr.bf16.mxu0 0
        %3246 = vmatpush1.bf16.msra.mxu0 %v2247
        %3247 = vmatprep.subr.bf16.mxu0 0
        %3248 = vmatpush1.bf16.msra.mxu0 %v2248
        %3249 = vmatprep.subr.bf16.mxu0 0
        %3250 = vmatpush1.bf16.msra.mxu0 %v2249
        %3251 = vmatprep.subr.bf16.mxu0 0
        %3252 = vmatpush1.bf16.msra.mxu0 %v2250
        %3253 = vmatprep.subr.bf16.mxu0 0
        %3254 = vmatpush1.bf16.msra.mxu0 %v2251
        %3255 = vmatprep.subr.bf16.mxu0 0
        %3256 = vmatpush1.bf16.msra.mxu0 %v2252
        %3257 = vmatprep.subr.bf16.mxu0 0
        %3258 = vmatpush1.bf16.msra.mxu0 %v2253
        %3259 = vmatprep.subr.bf16.mxu0 0
        %3260 = vmatpush1.bf16.msra.mxu0 %v2254
        %3261 = vmatprep.mubr.bf16.mxu0 %v1306
        %3262 = vmatmul.mubr.bf16.gmra.mrb[0].mxu0 %v1305
        %v3263 = vpop.f32.mrb[0].mxu0
        %v3264 = vadd.f32 %v3103, %v3263
        %v3265 = vpop.f32.mrb[0].mxu0
        %v3266 = vpop.f32.mrb[0].mxu0
        %v3267 = vadd.f32 %v3106, %v3266
        %v3268 = vpop.f32.mrb[0].mxu0
        %3269 = vmatprep.mubr.bf16.mxu0 %v1320
        %3270 = vmatmul.mubr.bf16.gmra.mrb[0].mxu0 %v1319
        %v3271 = vpop.f32.mrb[0].mxu0
        %v3272 = vadd.f32 %v3111, %v3271
        %v3273 = vpop.f32.mrb[0].mxu0
        %v3274 = vpop.f32.mrb[0].mxu0
        %v3275 = vadd.f32 %v3114, %v3274
        %v3276 = vpop.f32.mrb[0].mxu0
        %3277 = vmatprep.mubr.bf16.mxu0 %v1334
        %3278 = vmatmul.mubr.bf16.gmra.mrb[0].mxu0 %v1333
        %v3279 = vpop.f32.mrb[0].mxu0
        %v3280 = vadd.f32 %v3119, %v3279
        %v3281 = vpop.f32.mrb[0].mxu0
        %v3282 = vpop.f32.mrb[0].mxu0
        %v3283 = vadd.f32 %v3122, %v3282
        %v3284 = vpop.f32.mrb[0].mxu0
        %3285 = vmatprep.mubr.bf16.mxu0 %v1348
        %3286 = vmatmul.mubr.bf16.gmra.mrb[0].mxu0 %v1347
        %v3287 = vpop.f32.mrb[0].mxu0
        %v3288 = vadd.f32 %v3127, %v3287
        %v3289 = vpop.f32.mrb[0].mxu0
        %v3290 = vpop.f32.mrb[0].mxu0
        %v3291 = vadd.f32 %v3130, %v3290
        %v3292 = vpop.f32.mrb[0].mxu0
        %3293 = vmatprep.mubr.bf16.mxu0 %v1362
        %3294 = vmatmul.mubr.bf16.gmra.mrb[0].mxu0 %v1361
        %v3295 = vpop.f32.mrb[0].mxu0
        %v3296 = vadd.f32 %v3135, %v3295
        %v3297 = vpop.f32.mrb[0].mxu0
        %v3298 = vpop.f32.mrb[0].mxu0
        %v3299 = vadd.f32 %v3138, %v3298
        %v3300 = vpop.f32.mrb[0].mxu0
        %3301 = vmatprep.mubr.bf16.mxu0 %v1376
        %3302 = vmatmul.mubr.bf16.gmra.mrb[0].mxu0 %v1375
        %v3303 = vpop.f32.mrb[0].mxu0
        %v3304 = vadd.f32 %v3143, %v3303
        %v3305 = vpop.f32.mrb[0].mxu0
        %v3306 = vpop.f32.mrb[0].mxu0
        %v3307 = vadd.f32 %v3146, %v3306
        %v3308 = vpop.f32.mrb[0].mxu0
        %3309 = vmatprep.mubr.bf16.mxu0 %v1390
        %3310 = vmatmul.mubr.bf16.gmra.mrb[0].mxu0 %v1389
        %v3311 = vpop.f32.mrb[0].mxu0
        %v3312 = vadd.f32 %v3151, %v3311
        %v3313 = vpop.f32.mrb[0].mxu0
        %v3314 = vpop.f32.mrb[0].mxu0
        %v3315 = vadd.f32 %v3154, %v3314
        %v3316 = vpop.f32.mrb[0].mxu0
        %3317 = vmatprep.mubr.bf16.mxu0 %v1404
        %3318 = vmatmul.mubr.bf16.gmra.mrb[0].mxu0 %v1403
        %v3319 = vpop.f32.mrb[0].mxu0
        %v3320 = vadd.f32 %v3159, %v3319
        %v3321 = vpop.f32.mrb[0].mxu0
        %v3322 = vpop.f32.mrb[0].mxu0
        %v3323 = vadd.f32 %v3162, %v3322
        %v3324 = vpop.f32.mrb[0].mxu0
        %3325 = vmatprep.mubr.bf16.mxu0 %v1418
        %3326 = vmatmul.mubr.bf16.gmra.mrb[0].mxu0 %v1417
        %v3327 = vpop.f32.mrb[0].mxu0
        %v3328 = vadd.f32 %v3167, %v3327
        %v3329 = vpop.f32.mrb[0].mxu0
        %v3330 = vpop.f32.mrb[0].mxu0
        %v3331 = vadd.f32 %v3170, %v3330
        %v3332 = vpop.f32.mrb[0].mxu0
        %3333 = vmatprep.mubr.bf16.mxu0 %v1432
        %3334 = vmatmul.mubr.bf16.gmra.mrb[0].mxu0 %v1431
        %v3335 = vpop.f32.mrb[0].mxu0
        %v3336 = vadd.f32 %v3175, %v3335
        %v3337 = vpop.f32.mrb[0].mxu0
        %v3338 = vpop.f32.mrb[0].mxu0
        %v3339 = vadd.f32 %v3178, %v3338
        %v3340 = vpop.f32.mrb[0].mxu0
        %3341 = vmatprep.mubr.bf16.mxu0 %v1446
        %3342 = vmatmul.mubr.bf16.gmra.mrb[0].mxu0 %v1445
        %v3343 = vpop.f32.mrb[0].mxu0
        %v3344 = vadd.f32 %v3183, %v3343
        %v3345 = vpop.f32.mrb[0].mxu0
        %v3346 = vpop.f32.mrb[0].mxu0
        %v3347 = vadd.f32 %v3186, %v3346
        %v3348 = vpop.f32.mrb[0].mxu0
        %3349 = vmatprep.mubr.bf16.mxu0 %v1460
        %3350 = vmatmul.mubr.bf16.gmra.mrb[0].mxu0 %v1459
        %v3351 = vpop.f32.mrb[0].mxu0
        %v3352 = vadd.f32 %v3191, %v3351
        %v3353 = vpop.f32.mrb[0].mxu0
        %v3354 = vpop.f32.mrb[0].mxu0
        %v3355 = vadd.f32 %v3194, %v3354
        %v3356 = vpop.f32.mrb[0].mxu0
        %3357 = vmatprep.mubr.bf16.mxu0 %v1474
        %3358 = vmatmul.mubr.bf16.gmra.mrb[0].mxu0 %v1473
        %v3359 = vpop.f32.mrb[0].mxu0
        %v3360 = vadd.f32 %v3199, %v3359
        %v3361 = vpop.f32.mrb[0].mxu0
        %v3362 = vpop.f32.mrb[0].mxu0
        %v3363 = vadd.f32 %v3202, %v3362
        %v3364 = vpop.f32.mrb[0].mxu0
        %3365 = vmatprep.mubr.bf16.mxu0 %v1488
        %3366 = vmatmul.mubr.bf16.gmra.mrb[0].mxu0 %v1487
        %v3367 = vpop.f32.mrb[0].mxu0
        %v3368 = vadd.f32 %v3207, %v3367
        %v3369 = vpop.f32.mrb[0].mxu0
        %v3370 = vpop.f32.mrb[0].mxu0
        %v3371 = vadd.f32 %v3210, %v3370
        %v3372 = vpop.f32.mrb[0].mxu0
        %3373 = vmatprep.mubr.bf16.mxu0 %v1502
        %3374 = vmatmul.mubr.bf16.gmra.mrb[0].mxu0 %v1501
        %v3375 = vpop.f32.mrb[0].mxu0
        %v3376 = vadd.f32 %v3215, %v3375
        %v3377 = vpop.f32.mrb[0].mxu0
        %v3378 = vpop.f32.mrb[0].mxu0
        %v3379 = vadd.f32 %v3218, %v3378
        %v3380 = vpop.f32.mrb[0].mxu0
        %3381 = vmatprep.mubr.bf16.mxu0 %v1516
        %3382 = vmatmul.mubr.bf16.gmra.mrb[0].mxu0 %v1515
        %v3383 = vpop.f32.mrb[0].mxu0
        %v3384 = vadd.f32 %v3223, %v3383
        %v3385 = vpop.f32.mrb[0].mxu0
        %v3386 = vpop.f32.mrb[0].mxu0
        %v3387 = vadd.f32 %v3226, %v3386
        %v3388 = vpop.f32.mrb[0].mxu0
        %3389 = vdwg.mxu0
        %3390 = vmatprep.subr.bf16.mxu0 0
        %3391 = vmatpush1.bf16.msra.mxu0 %v2255
        %3392 = vmatprep.subr.bf16.mxu0 0
        %3393 = vmatpush1.bf16.msra.mxu0 %v2256
        %3394 = vmatprep.subr.bf16.mxu0 0
        %3395 = vmatpush1.bf16.msra.mxu0 %v2257
        %3396 = vmatprep.subr.bf16.mxu0 0
        %3397 = vmatpush1.bf16.msra.mxu0 %v2258
        %3398 = vmatprep.subr.bf16.mxu0 0
        %3399 = vmatpush1.bf16.msra.mxu0 %v2259
        %3400 = vmatprep.subr.bf16.mxu0 0
        %3401 = vmatpush1.bf16.msra.mxu0 %v2260
        %3402 = vmatprep.subr.bf16.mxu0 0
        %3403 = vmatpush1.bf16.msra.mxu0 %v2261
        %3404 = vmatprep.subr.bf16.mxu0 0
        %3405 = vmatpush1.bf16.msra.mxu0 %v2262
        %3406 = vmatprep.subr.bf16.mxu0 0
        %3407 = vmatpush1.bf16.msra.mxu0 %v2263
        %3408 = vmatprep.subr.bf16.mxu0 0
        %3409 = vmatpush1.bf16.msra.mxu0 %v2264
        %3410 = vmatprep.subr.bf16.mxu0 0
        %3411 = vmatpush1.bf16.msra.mxu0 %v2265
        %3412 = vmatprep.subr.bf16.mxu0 0
        %3413 = vmatpush1.bf16.msra.mxu0 %v2266
        %3414 = vmatprep.subr.bf16.mxu0 0
        %3415 = vmatpush1.bf16.msra.mxu0 0
        %3416 = vmatprep.subr.bf16.mxu0 0
        %3417 = vmatpush1.bf16.msra.mxu0 0
        %3418 = vmatprep.subr.bf16.mxu0 0
        %3419 = vmatpush1.bf16.msra.mxu0 0
        %3420 = vmatprep.subr.bf16.mxu0 0
        %3421 = vmatpush1.bf16.msra.mxu0 0
        %3422 = vmatprep.mubr.bf16.mxu0 %v2377
        %3423 = vmatmul.mubr.bf16.gmra.mrb[0].mxu0 %v1307
        %v3424 = vpop.f32.mrb[0].mxu0
        %v3425 = vadd.f32 %v3264, %v3424
        %v3426 = vpop.f32.mrb[0].mxu0
        %v3427 = vpop.f32.mrb[0].mxu0
        %v3428 = vadd.f32 %v3267, %v3427
        %v3429 = vpop.f32.mrb[0].mxu0
        %3430 = vmatprep.mubr.bf16.mxu0 %v2380
        %3431 = vmatmul.mubr.bf16.gmra.mrb[0].mxu0 %v1321
        %v3432 = vpop.f32.mrb[0].mxu0
        %v3433 = vadd.f32 %v3272, %v3432
        %v3434 = vpop.f32.mrb[0].mxu0
        %v3435 = vpop.f32.mrb[0].mxu0
        %v3436 = vadd.f32 %v3275, %v3435
        %v3437 = vpop.f32.mrb[0].mxu0
        %3438 = vmatprep.mubr.bf16.mxu0 %v2383
        %3439 = vmatmul.mubr.bf16.gmra.mrb[0].mxu0 %v1335
        %v3440 = vpop.f32.mrb[0].mxu0
        %v3441 = vadd.f32 %v3280, %v3440
        %v3442 = vpop.f32.mrb[0].mxu0
        %v3443 = vpop.f32.mrb[0].mxu0
        %v3444 = vadd.f32 %v3283, %v3443
        %v3445 = vpop.f32.mrb[0].mxu0
        %3446 = vmatprep.mubr.bf16.mxu0 %v2386
        %3447 = vmatmul.mubr.bf16.gmra.mrb[0].mxu0 %v1349
        %v3448 = vpop.f32.mrb[0].mxu0
        %v3449 = vadd.f32 %v3288, %v3448
        %v3450 = vpop.f32.mrb[0].mxu0
        %v3451 = vpop.f32.mrb[0].mxu0
        %v3452 = vadd.f32 %v3291, %v3451
        %v3453 = vpop.f32.mrb[0].mxu0
        %3454 = vmatprep.mubr.bf16.mxu0 %v2389
        %3455 = vmatmul.mubr.bf16.gmra.mrb[0].mxu0 %v1363
        %v3456 = vpop.f32.mrb[0].mxu0
        %v3457 = vadd.f32 %v3296, %v3456
        %v3458 = vpop.f32.mrb[0].mxu0
        %v3459 = vpop.f32.mrb[0].mxu0
        %v3460 = vadd.f32 %v3299, %v3459
        %v3461 = vpop.f32.mrb[0].mxu0
        %3462 = vmatprep.mubr.bf16.mxu0 %v2392
        %3463 = vmatmul.mubr.bf16.gmra.mrb[0].mxu0 %v1377
        %v3464 = vpop.f32.mrb[0].mxu0
        %v3465 = vadd.f32 %v3304, %v3464
        %v3466 = vpop.f32.mrb[0].mxu0
        %v3467 = vpop.f32.mrb[0].mxu0
        %v3468 = vadd.f32 %v3307, %v3467
        %v3469 = vpop.f32.mrb[0].mxu0
        %3470 = vmatprep.mubr.bf16.mxu0 %v2395
        %3471 = vmatmul.mubr.bf16.gmra.mrb[0].mxu0 %v1391
        %v3472 = vpop.f32.mrb[0].mxu0
        %v3473 = vadd.f32 %v3312, %v3472
        %v3474 = vpop.f32.mrb[0].mxu0
        %v3475 = vpop.f32.mrb[0].mxu0
        %v3476 = vadd.f32 %v3315, %v3475
        %v3477 = vpop.f32.mrb[0].mxu0
        %3478 = vmatprep.mubr.bf16.mxu0 %v2398
        %3479 = vmatmul.mubr.bf16.gmra.mrb[0].mxu0 %v1405
        %v3480 = vpop.f32.mrb[0].mxu0
        %v3481 = vadd.f32 %v3320, %v3480
        %v3482 = vpop.f32.mrb[0].mxu0
        %v3483 = vpop.f32.mrb[0].mxu0
        %v3484 = vadd.f32 %v3323, %v3483
        %v3485 = vpop.f32.mrb[0].mxu0
        %3486 = vmatprep.mubr.bf16.mxu0 %v2401
        %3487 = vmatmul.mubr.bf16.gmra.mrb[0].mxu0 %v1419
        %v3488 = vpop.f32.mrb[0].mxu0
        %v3489 = vadd.f32 %v3328, %v3488
        %v3490 = vpop.f32.mrb[0].mxu0
        %v3491 = vpop.f32.mrb[0].mxu0
        %v3492 = vadd.f32 %v3331, %v3491
        %v3493 = vpop.f32.mrb[0].mxu0
        %3494 = vmatprep.mubr.bf16.mxu0 %v2404
        %3495 = vmatmul.mubr.bf16.gmra.mrb[0].mxu0 %v1433
        %v3496 = vpop.f32.mrb[0].mxu0
        %v3497 = vadd.f32 %v3336, %v3496
        %v3498 = vpop.f32.mrb[0].mxu0
        %v3499 = vpop.f32.mrb[0].mxu0
        %v3500 = vadd.f32 %v3339, %v3499
        %v3501 = vpop.f32.mrb[0].mxu0
        %3502 = vmatprep.mubr.bf16.mxu0 %v2407
        %3503 = vmatmul.mubr.bf16.gmra.mrb[0].mxu0 %v1447
        %v3504 = vpop.f32.mrb[0].mxu0
        %v3505 = vadd.f32 %v3344, %v3504
        %v3506 = vpop.f32.mrb[0].mxu0
        %v3507 = vpop.f32.mrb[0].mxu0
        %v3508 = vadd.f32 %v3347, %v3507
        %v3509 = vpop.f32.mrb[0].mxu0
        %3510 = vmatprep.mubr.bf16.mxu0 %v2410
        %3511 = vmatmul.mubr.bf16.gmra.mrb[0].mxu0 %v1461
        %v3512 = vpop.f32.mrb[0].mxu0
        %v3513 = vadd.f32 %v3352, %v3512
        %v3514 = vpop.f32.mrb[0].mxu0
        %v3515 = vpop.f32.mrb[0].mxu0
        %v3516 = vadd.f32 %v3355, %v3515
        %v3517 = vpop.f32.mrb[0].mxu0
        %3518 = vmatprep.mubr.bf16.mxu0 %v2413
        %3519 = vmatmul.mubr.bf16.gmra.mrb[0].mxu0 %v1475
        %v3520 = vpop.f32.mrb[0].mxu0
        %v3521 = vadd.f32 %v3360, %v3520
        %v3522 = vpop.f32.mrb[0].mxu0
        %v3523 = vpop.f32.mrb[0].mxu0
        %v3524 = vadd.f32 %v3363, %v3523
        %v3525 = vpop.f32.mrb[0].mxu0
        %3526 = vmatprep.mubr.bf16.mxu0 %v2416
        %3527 = vmatmul.mubr.bf16.gmra.mrb[0].mxu0 %v1489
        %v3528 = vpop.f32.mrb[0].mxu0
        %v3529 = vadd.f32 %v3368, %v3528
        %v3530 = vpop.f32.mrb[0].mxu0
        %v3531 = vpop.f32.mrb[0].mxu0
        %v3532 = vadd.f32 %v3371, %v3531
        %v3533 = vpop.f32.mrb[0].mxu0
        %3534 = vmatprep.mubr.bf16.mxu0 %v2419
        %3535 = vmatmul.mubr.bf16.gmra.mrb[0].mxu0 %v1503
        %v3536 = vpop.f32.mrb[0].mxu0
        %v3537 = vadd.f32 %v3376, %v3536
        %v3538 = vpop.f32.mrb[0].mxu0
        %v3539 = vpop.f32.mrb[0].mxu0
        %v3540 = vadd.f32 %v3379, %v3539
        %v3541 = vpop.f32.mrb[0].mxu0
        %3542 = vmatprep.mubr.bf16.mxu0 %v2422
        %3543 = vmatmul.mubr.bf16.gmra.mrb[0].mxu0 %v1517
        %v3544 = vpop.f32.mrb[0].mxu0
        %v3545 = vadd.f32 %v3384, %v3544
        %v3546 = vpop.f32.mrb[0].mxu0
        %v3547 = vpop.f32.mrb[0].mxu0
        %v3548 = vadd.f32 %v3387, %v3547
        %v3549 = vpop.f32.mrb[0].mxu0
        %3550 = vdwg.mxu0
        %v3551 = vmax.f32 %v3425, 0.0
        %v3552 = vmax.f32 %v3428, 0.0
        %v3553 = vmax.f32 %v3433, 0.0
        %v3554 = vmax.f32 %v3436, 0.0
        %v3555 = vmax.f32 %v3441, 0.0
        %v3556 = vmax.f32 %v3444, 0.0
        %v3557 = vmax.f32 %v3449, 0.0
        %v3558 = vmax.f32 %v3452, 0.0
        %v3559 = vmax.f32 %v3457, 0.0
        %v3560 = vmax.f32 %v3460, 0.0
        %v3561 = vmax.f32 %v3465, 0.0
        %v3562 = vmax.f32 %v3468, 0.0
        %v3563 = vmax.f32 %v3473, 0.0
        %v3564 = vmax.f32 %v3476, 0.0
        %v3565 = vmax.f32 %v3481, 0.0
        %v3566 = vmax.f32 %v3484, 0.0
        %v3567 = vmax.f32 %v3489, 0.0
        %v3568 = vmax.f32 %v3492, 0.0
        %v3569 = vmax.f32 %v3497, 0.0
        %v3570 = vmax.f32 %v3500, 0.0
        %v3571 = vmax.f32 %v3505, 0.0
        %v3572 = vmax.f32 %v3508, 0.0
        %v3573 = vmax.f32 %v3513, 0.0
        %v3574 = vmax.f32 %v3516, 0.0
        %v3575 = vmax.f32 %v3521, 0.0
        %v3576 = vmax.f32 %v3524, 0.0
        %v3577 = vmax.f32 %v3529, 0.0
        %v3578 = vmax.f32 %v3532, 0.0
        %v3579 = vmax.f32 %v3537, 0.0
        %v3580 = vmax.f32 %v3540, 0.0
        %v3581 = vmax.f32 %v3545, 0.0
        %v3582 = vmax.f32 %v3548, 0.0
        %3583 = vst [vmem:[%s166] sm:$0xff] %v3551
        %3584 = vst [vmem:[%s166 + $0x8] sm:$0xff] %v3552
        %3585 = vst [vmem:[%s166 + $0x10] sm:$0xff] %v3553
        %3586 = vst [vmem:[%s166 + $0x18] sm:$0xff] %v3554
        %3587 = vst [vmem:[%s166 + $0x20] sm:$0xff] %v3555
        %3588 = vst [vmem:[%s166 + $0x28] sm:$0xff] %v3556
        %3589 = vst [vmem:[%s166 + $0x30] sm:$0xff] %v3557
        %3590 = vst [vmem:[%s166 + $0x38] sm:$0xff] %v3558
        %3591 = vst [vmem:[%s166 + $0x40] sm:$0xff] %v3559
        %3592 = vst [vmem:[%s166 + $0x48] sm:$0xff] %v3560
        %3593 = vst [vmem:[%s166 + $0x50] sm:$0xff] %v3561
        %3594 = vst [vmem:[%s166 + $0x58] sm:$0xff] %v3562
        %3595 = vst [vmem:[%s166 + $0x60] sm:$0xff] %v3563
        %3596 = vst [vmem:[%s166 + $0x68] sm:$0xff] %v3564
        %3597 = vst [vmem:[%s166 + $0x70] sm:$0xff] %v3565
        %3598 = vst [vmem:[%s166 + $0x78] sm:$0xff] %v3566
        %3599 = vst [vmem:[%s166 + $0x80] sm:$0xff] %v3567
        %3600 = vst [vmem:[%s166 + $0x88] sm:$0xff] %v3568
        %3601 = vst [vmem:[%s166 + $0x90] sm:$0xff] %v3569
        %3602 = vst [vmem:[%s166 + $0x98] sm:$0xff] %v3570
        %3603 = vst [vmem:[%s166 + $0xa0] sm:$0xff] %v3571
        %3604 = vst [vmem:[%s166 + $0xa8] sm:$0xff] %v3572
        %3605 = vst [vmem:[%s166 + $0xb0] sm:$0xff] %v3573
        %3606 = vst [vmem:[%s166 + $0xb8] sm:$0xff] %v3574
        %3607 = vst [vmem:[%s166 + $0xc0] sm:$0xff] %v3575
        %3608 = vst [vmem:[%s166 + $0xc8] sm:$0xff] %v3576
        %3609 = vst [vmem:[%s166 + $0xd0] sm:$0xff] %v3577
        %3610 = vst [vmem:[%s166 + $0xd8] sm:$0xff] %v3578
        %3611 = vst [vmem:[%s166 + $0xe0] sm:$0xff] %v3579
        %3612 = vst [vmem:[%s166 + $0xe8] sm:$0xff] %v3580
        %3613 = vst [vmem:[%s166 + $0xf0] sm:$0xff] %v3581
        %3614 = vst [vmem:[%s166 + $0xf8] sm:$0xff] %v3582
        %s3615 = sand.u32 %s93, 1
        %s3616 = scalar_lea.sflag [#allocation3], %s3615
        %s3617 = sand.u32 %s93, 1
        %s3618 = smul.addr %s3617, 256
        %s3619 = scalar_lea.vmem [#allocation2], %s3618
        // Predicated region
        $region33: #{tpu_custom_call.1} parent=31 // pred_check
          %p3620 = pneg %p103
        $region34: #{tpu_custom_call.1} parent=31 // pred_check_branch
          %3622 = sbr.rel (%p3620) target = $region36
        $region35: #{tpu_custom_call.1} parent=31 // pred_region
          %s3623 = smul.u32 32, %s17
          %s3625 = ssub.s32 4096, 4096
          %3626 = vsyncadd %s3616, %s3625
          %s3627 = smul.addr %s3623, 128
          %s3628 = scalar_lea.hbm %s3, %s3627
          %s3629 = sshll.u32 %s3619, 4
          %s3630 = int_to_ptr.vmem [resolvable:$true] %s3629
          %3635 = dma.vmem_to_hbm [thread:$0]  %s3630, 4096, %s3628, %s3616, 128, 128, 8
        $region36: #{tpu_custom_call.1} parent=31 // pred_fallthru
          _
      $region32: #{tpu_custom_call.1} parent=5 // pred_fallthru
        _
      %p3636 = scmp.le.s32.totalorder 2, %s12
      // Predicated region
      $region37: #{tpu_custom_call.1} parent=5 // pred_check
        %p3637 = pneg %p3636
      $region38: #{tpu_custom_call.1} parent=5 // pred_check_branch
        %3639 = sbr.rel (%p3637) target = $region40
      $region39: #{tpu_custom_call.1} parent=5 // pred_region
        %s3640 = ssub.s32 %s12, 2
        // Predicated region
        $region41: #{tpu_custom_call.1} parent=39 // pred_check
          %p3641 = pneg %p109
        $region42: #{tpu_custom_call.1} parent=39 // pred_check_branch
          %3643 = sbr.rel (%p3641) target = $region44
        $region43: #{tpu_custom_call.1} parent=39 // pred_region
          %s3644 = sand.u32 %s94, 1
          %s3645 = scalar_lea.sflag [#allocation3], %s3644
          %s3646 = sand.u32 %s94, 1
          %s3647 = smul.addr %s3646, 256
          %s3648 = scalar_lea.vmem [#allocation2], %s3647
          %3649 = dma.done %s3645, 4096
        $region44: #{tpu_custom_call.1} parent=39 // pred_fallthru
          _
      $region40: #{tpu_custom_call.1} parent=5 // pred_fallthru
        _
    $region6: #{tpu_custom_call.1} parent=1 // loop_footer
      %s16 = sadd.s32 1, %s12
    $region7: #{tpu_custom_call.1} parent=1 // loop_footer_branch
      %11 = sbr.rel target = $region3
    $region8: #{tpu_custom_call.1} parent=1 // loop_exit
      _
    %3650 = vsyncpa [#allocation3], 1
    %s3651 = scalar_lea.sflag [#allocation3], 1
    %3652 = vsyncpa %s3651, 1

</llo_original>
